<compile_context>
chip_gen: v7x
topology: tpu7x:2x2x1
jax: 0.10.0
libtpu: 0.0.40
codegen_flags: <defaults>
</compile_context>

<pallas_src>
import jax
import jax.numpy as jnp
from jax.experimental import pallas as pl
from jax.experimental.pallas import tpu as pltpu

# Problem sizes (from the PyTorch script's globals).
INPUT_SIZE = 10
HIDDEN_SIZE = 50
OUTPUT_SIZE = 5
NUM_LAYERS = 2          # kernel below is specialized to 2 stacked RNN layers
BATCH = 2
SEQ = 8

B_PAD = 8               # batch padded to the f32 sublane count
O_PAD = 128             # FC output padded to one full lane tile

# ---- packed weight/bias/h0 slab layout (lane width = HIDDEN_SIZE), 8-row aligned ----
_R_WIH0 = 0                                   # rows [0, 10):   W_ih_l0^T  (I, H)
_R_WHH0 = 16                                  # rows [16, 66):  W_hh_l0^T  (H, H)
_R_WIH1 = 72                                  # rows [72, 122): W_ih_l1^T  (H, H)
_R_WHH1 = 128                                 # rows [128,178): W_hh_l1^T  (H, H)
_R_B    = 184                                 # row 184 = b_l0, row 185 = b_l1 (b_ih+b_hh)
_R_H0L0 = 192                                 # rows [192,200): h0 layer 0 (B_PAD, H)
_R_H0L1 = 200                                 # rows [200,208): h0 layer 1 (B_PAD, H)
_W_ROWS = 208

# ---- FC slab layout (lane width = O_PAD = 128) ----
_R_WFC = 0                                    # rows [0, 50): W_fc^T, valid cols [0, O)
_R_BFC = 56                                   # row 56: b_fc, valid cols [0, O)
_FC_ROWS = 64


def _rnn_fc_kernel(x_ref, w_ref, fc_ref, out_ref, hn_ref, hseq1_ref):
    """Fused 2-layer Elman RNN (tanh) + Linear head, wavefronted over layers.

    x_ref    : (T*B_PAD, I)       time-major flat input (batch rows [B, 8) are zero pad)
    w_ref    : (_W_ROWS, H)       packed weights + combined biases + initial hidden states
    fc_ref   : (_FC_ROWS, O_PAD)  lane-dense FC weights/bias (cols [O, 128) are zero)
    out_ref  : (T*B_PAD, O_PAD)   fc(layer-1 output) per time step (lane-dense store)
    hn_ref   : (L*B_PAD, H)       final hidden state per layer, flat
    hseq1_ref: (T*B_PAD, H)       VMEM scratch holding layer-1 hiddens over time
    """
    TB, I = x_ref.shape
    H = w_ref.shape[1]
    BP = B_PAD
    T = TB // BP

    # ---- hoisted invariant loads for the recurrent loop (FC loads deferred) ----
    wih0 = w_ref[_R_WIH0:_R_WIH0 + I, :]              # (I, H)
    whh0 = w_ref[_R_WHH0:_R_WHH0 + H, :]              # (H, H)
    wih1 = w_ref[_R_WIH1:_R_WIH1 + H, :]              # (H, H)
    whh1 = w_ref[_R_WHH1:_R_WHH1 + H, :]              # (H, H)
    b0 = w_ref[_R_B:_R_B + 1, :]                      # (1, H)
    b1 = jnp.broadcast_to(w_ref[_R_B + 1:_R_B + 2, :], (BP, H))   # hoisted broadcast
    h0 = w_ref[_R_H0L0:_R_H0L0 + BP, :]               # (BP, H) layer-0 hidden
    h1 = w_ref[_R_H0L1:_R_H0L1 + BP, :]               # (BP, H) layer-1 hidden

    # ---- non-recurrent half of layer 0: one batched matmul over all T*BP rows ----
    xproj0 = jnp.dot(x_ref[...], wih0,
                     preferred_element_type=jnp.float32) + b0     # (T*BP, H)

    # ---- wavefront over T+1 fully-unrolled steps ----
    # step t: layer 1 consumes xp1 (= layer-0 output of step t-1, already projected
    # through Wih1) and h1; layer 0 consumes xproj0[t] and h0. The h0->h0 and h1->h1
    # chains are each just matmul -> add -> tanh; the xp1 projection is off both chains.
    xp1 = None
    for t in range(T + 1):
        if t >= 1:
            h1 = jnp.tanh(xp1 + jnp.dot(h1, whh1,
                                        preferred_element_type=jnp.float32))
            hseq1_ref[(t - 1) * BP:t * BP, :] = h1                # whole sublane tile
        if t < T:
            h0 = jnp.tanh(xproj0[t * BP:(t + 1) * BP, :]
                          + jnp.dot(h0, whh0, preferred_element_type=jnp.float32))
            # non-recurrent half of layer 1's next step; ready as soon as h0_t is
            xp1 = jnp.dot(h0, wih1, preferred_element_type=jnp.float32) + b1

    hn_ref[0:BP, :] = h0
    hn_ref[BP:2 * BP, :] = h1

    # ---- FC head: deferred loads, one batched matmul, one lane-dense (128) store ----
    wfc = fc_ref[_R_WFC:_R_WFC + H, :]                # (H, O_PAD)
    bfc = fc_ref[_R_BFC:_R_BFC + 1, :]                # (1, O_PAD)
    out_ref[...] = jnp.dot(hseq1_ref[...], wfc,
                           preferred_element_type=jnp.float32) + bfc


@jax.jit
def rnn_model_forward(x, h0, params):
    """x: (B, T, I) float32, h0: (L, B, H) float32. Returns (out (B,T,O), hn (L,B,H))."""
    B, T, I = x.shape
    H, O, L = HIDDEN_SIZE, OUTPUT_SIZE, NUM_LAYERS
    BP = B_PAD

    # ---- glue: batch padding to 8 rows + time-major flattening (cold path, pure JAX) ----
    x_p = jnp.zeros((BP, T, I), jnp.float32).at[:B].set(x)
    x2d = jnp.transpose(x_p, (1, 0, 2)).reshape(T * BP, I)
    h0_p = jnp.zeros((L, BP, H), jnp.float32).at[:, :B].set(h0)

    # Packed weight / bias / h0 slab (lane width H), all segments 8-row aligned.
    w = jnp.zeros((_W_ROWS, H), jnp.float32)
    w = w.at[_R_WIH0:_R_WIH0 + I].set(params["w_ih_l0"].T)
    w = w.at[_R_WHH0:_R_WHH0 + H].set(params["w_hh_l0"].T)
    w = w.at[_R_WIH1:_R_WIH1 + H].set(params["w_ih_l1"].T)
    w = w.at[_R_WHH1:_R_WHH1 + H].set(params["w_hh_l1"].T)
    w = w.at[_R_B].set(params["b_ih_l0"] + params["b_hh_l0"])
    w = w.at[_R_B + 1].set(params["b_ih_l1"] + params["b_hh_l1"])
    w = w.at[_R_H0L0:_R_H0L0 + BP].set(h0_p[0])
    w = w.at[_R_H0L1:_R_H0L1 + BP].set(h0_p[1])

    # Lane-dense FC slab (lane width 128; cols [O, 128) zero so padded output cols are 0).
    fc = jnp.zeros((_FC_ROWS, O_PAD), jnp.float32)
    fc = fc.at[_R_WFC:_R_WFC + H, :O].set(params["w_fc"].T)
    fc = fc.at[_R_BFC, :O].set(params["b_fc"])

    vmem = pl.BlockSpec(memory_space=pltpu.MemorySpace.VMEM)
    out2d, hn2d = pl.pallas_call(
        _rnn_fc_kernel,
        out_shape=(
            jax.ShapeDtypeStruct((T * BP, O_PAD), jnp.float32),
            jax.ShapeDtypeStruct((L * BP, H), jnp.float32),
        ),
        in_specs=[vmem, vmem, vmem],
        out_specs=(vmem, vmem),
        scratch_shapes=[pltpu.VMEM((T * BP, H), jnp.float32)],
        # Single invocation, fully VMEM-resident (~150 KB). Per review: no grid, no
        # cross-TensorCore split; only revisit if batch grows to hundreds of rows.
    )(x2d, w, fc)

    out = jnp.transpose(out2d.reshape(T, BP, O_PAD), (1, 0, 2))[:B, :, :O]   # (B, T, O)
    hn = hn2d.reshape(L, BP, H)[:, :B, :]                                    # (L, B, H)
    return out, hn


def _reference_forward(x, h0, params):
    """Pure-JAX reference matching torch.nn.RNN(tanh, batch_first) + Linear."""
    B, T, _ = x.shape
    layer_in = x
    hns = []
    for l in range(NUM_LAYERS):
        wih = params[f"w_ih_l{l}"]
        whh = params[f"w_hh_l{l}"]
        b = params[f"b_ih_l{l}"] + params[f"b_hh_l{l}"]
        h = h0[l]
        outs = []
        for t in range(T):
            h = jnp.tanh(layer_in[:, t, :] @ wih.T + h @ whh.T + b)
            outs.append(h)
        layer_in = jnp.stack(outs, axis=1)
        hns.append(h)
    out = layer_in @ params["w_fc"].T + params["b_fc"]
    return out, jnp.stack(hns, axis=0)


def _init_params(key):
    """Deterministic init with the same shapes as torch.nn.RNN / nn.Linear."""
    ks = jax.random.split(key, 12)
    bound = 1.0 / jnp.sqrt(HIDDEN_SIZE)
    u = lambda k, shape: jax.random.uniform(k, shape, jnp.float32, -bound, bound)
    return {
        "w_ih_l0": u(ks[0], (HIDDEN_SIZE, INPUT_SIZE)),
        "w_hh_l0": u(ks[1], (HIDDEN_SIZE, HIDDEN_SIZE)),
        "b_ih_l0": u(ks[2], (HIDDEN_SIZE,)),
        "b_hh_l0": u(ks[3], (HIDDEN_SIZE,)),
        "w_ih_l1": u(ks[4], (HIDDEN_SIZE, HIDDEN_SIZE)),
        "w_hh_l1": u(ks[5], (HIDDEN_SIZE, HIDDEN_SIZE)),
        "b_ih_l1": u(ks[6], (HIDDEN_SIZE,)),
        "b_hh_l1": u(ks[7], (HIDDEN_SIZE,)),
        "w_fc":    u(ks[8], (OUTPUT_SIZE, HIDDEN_SIZE)),
        "b_fc":    u(ks[9], (OUTPUT_SIZE,)),
    }


if __name__ == "__main__":
    key = jax.random.PRNGKey(0)
    k_param, k_x = jax.random.split(key)
    params = _init_params(k_param)

    x = jax.random.normal(k_x, (BATCH, SEQ, INPUT_SIZE), jnp.float32)
    h0 = jnp.zeros((NUM_LAYERS, BATCH, HIDDEN_SIZE), jnp.float32)  # PyTorch default h0=None

    out, hn = rnn_model_forward(x, h0, params)
    out, hn = jax.block_until_ready((out, hn))

    ref_out, ref_hn = _reference_forward(x, h0, params)
    assert out.shape == (BATCH, SEQ, OUTPUT_SIZE) and hn.shape == (NUM_LAYERS, BATCH, HIDDEN_SIZE)
    assert jnp.allclose(out, ref_out, atol=2e-5, rtol=2e-5)
    assert jnp.allclose(hn, ref_hn, atol=2e-5, rtol=2e-5)

    print("KERNEL_OK")
</pallas_src>

<mosaic_0001>
module attributes {stable_mosaic.version = 11 : i64} {
  func.func @_rnn_fc_kernel(%arg0: memref<64x10xf32, #tpu.memory_space<vmem>>, %arg1: memref<208x50xf32, #tpu.memory_space<vmem>>, %arg2: memref<64x128xf32, #tpu.memory_space<vmem>>, %arg3: memref<64x128xf32, #tpu.memory_space<vmem>>, %arg4: memref<16x50xf32, #tpu.memory_space<vmem>>, %arg5: memref<64x50xf32, #tpu.memory_space<vmem>>) attributes {dimension_semantics = [], scalar_prefetch = 0 : i64, scratch_operands = 1 : i64, tpu.core_type = #tpu.core_type<tc>} {
    %c0 = arith.constant 0 : index
    %c0_0 = arith.constant 0 : index
    %0 = vector.load %arg1[%c0, %c0_0] : memref<208x50xf32, #tpu.memory_space<vmem>>, vector<10x50xf32>
    %c16 = arith.constant 16 : index
    %c0_1 = arith.constant 0 : index
    %1 = vector.load %arg1[%c16, %c0_1] : memref<208x50xf32, #tpu.memory_space<vmem>>, vector<50x50xf32>
    %c72 = arith.constant 72 : index
    %c0_2 = arith.constant 0 : index
    %2 = vector.load %arg1[%c72, %c0_2] : memref<208x50xf32, #tpu.memory_space<vmem>>, vector<50x50xf32>
    %c128 = arith.constant 128 : index
    %c0_3 = arith.constant 0 : index
    %3 = vector.load %arg1[%c128, %c0_3] : memref<208x50xf32, #tpu.memory_space<vmem>>, vector<50x50xf32>
    %c184 = arith.constant 184 : index
    %c0_4 = arith.constant 0 : index
    %4 = vector.load %arg1[%c184, %c0_4] : memref<208x50xf32, #tpu.memory_space<vmem>>, vector<1x50xf32>
    %c185 = arith.constant 185 : index
    %c0_5 = arith.constant 0 : index
    %5 = vector.load %arg1[%c185, %c0_5] : memref<208x50xf32, #tpu.memory_space<vmem>>, vector<1x50xf32>
    %6 = vector.shape_cast %5 : vector<1x50xf32> to vector<1x50xf32>
    %7 = vector.broadcast %6 : vector<1x50xf32> to vector<8x50xf32>
    %c192 = arith.constant 192 : index
    %c0_6 = arith.constant 0 : index
    %8 = vector.load %arg1[%c192, %c0_6] : memref<208x50xf32, #tpu.memory_space<vmem>>, vector<8x50xf32>
    %c200 = arith.constant 200 : index
    %c0_7 = arith.constant 0 : index
    %9 = vector.load %arg1[%c200, %c0_7] : memref<208x50xf32, #tpu.memory_space<vmem>>, vector<8x50xf32>
    %c0_8 = arith.constant 0 : index
    %c0_9 = arith.constant 0 : index
    %10 = vector.load %arg0[%c0_8, %c0_9] : memref<64x10xf32, #tpu.memory_space<vmem>>, vector<64x10xf32>
    %cst = arith.constant dense<0.000000e+00> : vector<64x50xf32>
    %11 = tpu.matmul %10, %0, %cst {dimension_numbers = #tpu.dot_dimension_numbers<[1], [0], [0], [1], [0, 0, 1, 1], [], []>} : vector<64x10xf32>, vector<10x50xf32>, vector<64x50xf32> -> vector<64x50xf32>
    %12 = vector.broadcast %4 : vector<1x50xf32> to vector<64x50xf32>
    %13 = arith.addf %11, %12 : vector<64x50xf32>
    %14 = vector.extract_strided_slice %13 {offsets = [0, 0], sizes = [8, 50], strides = [1, 1]} : vector<64x50xf32> to vector<8x50xf32>
    %cst_10 = arith.constant dense<0.000000e+00> : vector<8x50xf32>
    %15 = tpu.matmul %8, %1, %cst_10 {dimension_numbers = #tpu.dot_dimension_numbers<[1], [0], [0], [1], [0, 0, 1, 1], [], []>} : vector<8x50xf32>, vector<50x50xf32>, vector<8x50xf32> -> vector<8x50xf32>
    %16 = arith.addf %14, %15 : vector<8x50xf32>
    %17 = math.tanh %16 : vector<8x50xf32>
    %cst_11 = arith.constant dense<0.000000e+00> : vector<8x50xf32>
    %18 = tpu.matmul %17, %2, %cst_11 {dimension_numbers = #tpu.dot_dimension_numbers<[1], [0], [0], [1], [0, 0, 1, 1], [], []>} : vector<8x50xf32>, vector<50x50xf32>, vector<8x50xf32> -> vector<8x50xf32>
    %19 = arith.addf %18, %7 : vector<8x50xf32>
    %cst_12 = arith.constant dense<0.000000e+00> : vector<8x50xf32>
    %20 = tpu.matmul %9, %3, %cst_12 {dimension_numbers = #tpu.dot_dimension_numbers<[1], [0], [0], [1], [0, 0, 1, 1], [], []>} : vector<8x50xf32>, vector<50x50xf32>, vector<8x50xf32> -> vector<8x50xf32>
    %21 = arith.addf %19, %20 : vector<8x50xf32>
    %22 = math.tanh %21 : vector<8x50xf32>
    %c0_13 = arith.constant 0 : index
    %c0_14 = arith.constant 0 : index
    %23 = vector.load %arg5[%c0_13, %c0_14] : memref<64x50xf32, #tpu.memory_space<vmem>>, vector<8x50xf32>
    tpu.vector_store %arg5[%c0_13, %c0_14], %22 {strides = array<i32>} : memref<64x50xf32, #tpu.memory_space<vmem>>, vector<8x50xf32>,
    %24 = vector.extract_strided_slice %13 {offsets = [8, 0], sizes = [8, 50], strides = [1, 1]} : vector<64x50xf32> to vector<8x50xf32>
    %cst_15 = arith.constant dense<0.000000e+00> : vector<8x50xf32>
    %25 = tpu.matmul %17, %1, %cst_15 {dimension_numbers = #tpu.dot_dimension_numbers<[1], [0], [0], [1], [0, 0, 1, 1], [], []>} : vector<8x50xf32>, vector<50x50xf32>, vector<8x50xf32> -> vector<8x50xf32>
    %26 = arith.addf %24, %25 : vector<8x50xf32>
    %27 = math.tanh %26 : vector<8x50xf32>
    %cst_16 = arith.constant dense<0.000000e+00> : vector<8x50xf32>
    %28 = tpu.matmul %27, %2, %cst_16 {dimension_numbers = #tpu.dot_dimension_numbers<[1], [0], [0], [1], [0, 0, 1, 1], [], []>} : vector<8x50xf32>, vector<50x50xf32>, vector<8x50xf32> -> vector<8x50xf32>
    %29 = arith.addf %28, %7 : vector<8x50xf32>
    %cst_17 = arith.constant dense<0.000000e+00> : vector<8x50xf32>
    %30 = tpu.matmul %22, %3, %cst_17 {dimension_numbers = #tpu.dot_dimension_numbers<[1], [0], [0], [1], [0, 0, 1, 1], [], []>} : vector<8x50xf32>, vector<50x50xf32>, vector<8x50xf32> -> vector<8x50xf32>
    %31 = arith.addf %29, %30 : vector<8x50xf32>
    %32 = math.tanh %31 : vector<8x50xf32>
    %c8 = arith.constant 8 : index
    %c0_18 = arith.constant 0 : index
    %33 = vector.load %arg5[%c8, %c0_18] : memref<64x50xf32, #tpu.memory_space<vmem>>, vector<8x50xf32>
    tpu.vector_store %arg5[%c8, %c0_18], %32 {strides = array<i32>} : memref<64x50xf32, #tpu.memory_space<vmem>>, vector<8x50xf32>,
    %34 = vector.extract_strided_slice %13 {offsets = [16, 0], sizes = [8, 50], strides = [1, 1]} : vector<64x50xf32> to vector<8x50xf32>
    %cst_19 = arith.constant dense<0.000000e+00> : vector<8x50xf32>
    %35 = tpu.matmul %27, %1, %cst_19 {dimension_numbers = #tpu.dot_dimension_numbers<[1], [0], [0], [1], [0, 0, 1, 1], [], []>} : vector<8x50xf32>, vector<50x50xf32>, vector<8x50xf32> -> vector<8x50xf32>
    %36 = arith.addf %34, %35 : vector<8x50xf32>
    %37 = math.tanh %36 : vector<8x50xf32>
    %cst_20 = arith.constant dense<0.000000e+00> : vector<8x50xf32>
    %38 = tpu.matmul %37, %2, %cst_20 {dimension_numbers = #tpu.dot_dimension_numbers<[1], [0], [0], [1], [0, 0, 1, 1], [], []>} : vector<8x50xf32>, vector<50x50xf32>, vector<8x50xf32> -> vector<8x50xf32>
    %39 = arith.addf %38, %7 : vector<8x50xf32>
    %cst_21 = arith.constant dense<0.000000e+00> : vector<8x50xf32>
    %40 = tpu.matmul %32, %3, %cst_21 {dimension_numbers = #tpu.dot_dimension_numbers<[1], [0], [0], [1], [0, 0, 1, 1], [], []>} : vector<8x50xf32>, vector<50x50xf32>, vector<8x50xf32> -> vector<8x50xf32>
    %41 = arith.addf %39, %40 : vector<8x50xf32>
    %42 = math.tanh %41 : vector<8x50xf32>
    %c16_22 = arith.constant 16 : index
    %c0_23 = arith.constant 0 : index
    %43 = vector.load %arg5[%c16_22, %c0_23] : memref<64x50xf32, #tpu.memory_space<vmem>>, vector<8x50xf32>
    tpu.vector_store %arg5[%c16_22, %c0_23], %42 {strides = array<i32>} : memref<64x50xf32, #tpu.memory_space<vmem>>, vector<8x50xf32>,
    %44 = vector.extract_strided_slice %13 {offsets = [24, 0], sizes = [8, 50], strides = [1, 1]} : vector<64x50xf32> to vector<8x50xf32>
    %cst_24 = arith.constant dense<0.000000e+00> : vector<8x50xf32>
    %45 = tpu.matmul %37, %1, %cst_24 {dimension_numbers = #tpu.dot_dimension_numbers<[1], [0], [0], [1], [0, 0, 1, 1], [], []>} : vector<8x50xf32>, vector<50x50xf32>, vector<8x50xf32> -> vector<8x50xf32>
    %46 = arith.addf %44, %45 : vector<8x50xf32>
    %47 = math.tanh %46 : vector<8x50xf32>
    %cst_25 = arith.constant dense<0.000000e+00> : vector<8x50xf32>
    %48 = tpu.matmul %47, %2, %cst_25 {dimension_numbers = #tpu.dot_dimension_numbers<[1], [0], [0], [1], [0, 0, 1, 1], [], []>} : vector<8x50xf32>, vector<50x50xf32>, vector<8x50xf32> -> vector<8x50xf32>
    %49 = arith.addf %48, %7 : vector<8x50xf32>
    %cst_26 = arith.constant dense<0.000000e+00> : vector<8x50xf32>
    %50 = tpu.matmul %42, %3, %cst_26 {dimension_numbers = #tpu.dot_dimension_numbers<[1], [0], [0], [1], [0, 0, 1, 1], [], []>} : vector<8x50xf32>, vector<50x50xf32>, vector<8x50xf32> -> vector<8x50xf32>
    %51 = arith.addf %49, %50 : vector<8x50xf32>
    %52 = math.tanh %51 : vector<8x50xf32>
    %c24 = arith.constant 24 : index
    %c0_27 = arith.constant 0 : index
    %53 = vector.load %arg5[%c24, %c0_27] : memref<64x50xf32, #tpu.memory_space<vmem>>, vector<8x50xf32>
    tpu.vector_store %arg5[%c24, %c0_27], %52 {strides = array<i32>} : memref<64x50xf32, #tpu.memory_space<vmem>>, vector<8x50xf32>,
    %54 = vector.extract_strided_slice %13 {offsets = [32, 0], sizes = [8, 50], strides = [1, 1]} : vector<64x50xf32> to vector<8x50xf32>
    %cst_28 = arith.constant dense<0.000000e+00> : vector<8x50xf32>
    %55 = tpu.matmul %47, %1, %cst_28 {dimension_numbers = #tpu.dot_dimension_numbers<[1], [0], [0], [1], [0, 0, 1, 1], [], []>} : vector<8x50xf32>, vector<50x50xf32>, vector<8x50xf32> -> vector<8x50xf32>
    %56 = arith.addf %54, %55 : vector<8x50xf32>
    %57 = math.tanh %56 : vector<8x50xf32>
    %cst_29 = arith.constant dense<0.000000e+00> : vector<8x50xf32>
    %58 = tpu.matmul %57, %2, %cst_29 {dimension_numbers = #tpu.dot_dimension_numbers<[1], [0], [0], [1], [0, 0, 1, 1], [], []>} : vector<8x50xf32>, vector<50x50xf32>, vector<8x50xf32> -> vector<8x50xf32>
    %59 = arith.addf %58, %7 : vector<8x50xf32>
    %cst_30 = arith.constant dense<0.000000e+00> : vector<8x50xf32>
    %60 = tpu.matmul %52, %3, %cst_30 {dimension_numbers = #tpu.dot_dimension_numbers<[1], [0], [0], [1], [0, 0, 1, 1], [], []>} : vector<8x50xf32>, vector<50x50xf32>, vector<8x50xf32> -> vector<8x50xf32>
    %61 = arith.addf %59, %60 : vector<8x50xf32>
    %62 = math.tanh %61 : vector<8x50xf32>
    %c32 = arith.constant 32 : index
    %c0_31 = arith.constant 0 : index
    %63 = vector.load %arg5[%c32, %c0_31] : memref<64x50xf32, #tpu.memory_space<vmem>>, vector<8x50xf32>
    tpu.vector_store %arg5[%c32, %c0_31], %62 {strides = array<i32>} : memref<64x50xf32, #tpu.memory_space<vmem>>, vector<8x50xf32>,
    %64 = vector.extract_strided_slice %13 {offsets = [40, 0], sizes = [8, 50], strides = [1, 1]} : vector<64x50xf32> to vector<8x50xf32>
    %cst_32 = arith.constant dense<0.000000e+00> : vector<8x50xf32>
    %65 = tpu.matmul %57, %1, %cst_32 {dimension_numbers = #tpu.dot_dimension_numbers<[1], [0], [0], [1], [0, 0, 1, 1], [], []>} : vector<8x50xf32>, vector<50x50xf32>, vector<8x50xf32> -> vector<8x50xf32>
    %66 = arith.addf %64, %65 : vector<8x50xf32>
    %67 = math.tanh %66 : vector<8x50xf32>
    %cst_33 = arith.constant dense<0.000000e+00> : vector<8x50xf32>
    %68 = tpu.matmul %67, %2, %cst_33 {dimension_numbers = #tpu.dot_dimension_numbers<[1], [0], [0], [1], [0, 0, 1, 1], [], []>} : vector<8x50xf32>, vector<50x50xf32>, vector<8x50xf32> -> vector<8x50xf32>
    %69 = arith.addf %68, %7 : vector<8x50xf32>
    %cst_34 = arith.constant dense<0.000000e+00> : vector<8x50xf32>
    %70 = tpu.matmul %62, %3, %cst_34 {dimension_numbers = #tpu.dot_dimension_numbers<[1], [0], [0], [1], [0, 0, 1, 1], [], []>} : vector<8x50xf32>, vector<50x50xf32>, vector<8x50xf32> -> vector<8x50xf32>
    %71 = arith.addf %69, %70 : vector<8x50xf32>
    %72 = math.tanh %71 : vector<8x50xf32>
    %c40 = arith.constant 40 : index
    %c0_35 = arith.constant 0 : index
    %73 = vector.load %arg5[%c40, %c0_35] : memref<64x50xf32, #tpu.memory_space<vmem>>, vector<8x50xf32>
    tpu.vector_store %arg5[%c40, %c0_35], %72 {strides = array<i32>} : memref<64x50xf32, #tpu.memory_space<vmem>>, vector<8x50xf32>,
    %74 = vector.extract_strided_slice %13 {offsets = [48, 0], sizes = [8, 50], strides = [1, 1]} : vector<64x50xf32> to vector<8x50xf32>
    %cst_36 = arith.constant dense<0.000000e+00> : vector<8x50xf32>
    %75 = tpu.matmul %67, %1, %cst_36 {dimension_numbers = #tpu.dot_dimension_numbers<[1], [0], [0], [1], [0, 0, 1, 1], [], []>} : vector<8x50xf32>, vector<50x50xf32>, vector<8x50xf32> -> vector<8x50xf32>
    %76 = arith.addf %74, %75 : vector<8x50xf32>
    %77 = math.tanh %76 : vector<8x50xf32>
    %cst_37 = arith.constant dense<0.000000e+00> : vector<8x50xf32>
    %78 = tpu.matmul %77, %2, %cst_37 {dimension_numbers = #tpu.dot_dimension_numbers<[1], [0], [0], [1], [0, 0, 1, 1], [], []>} : vector<8x50xf32>, vector<50x50xf32>, vector<8x50xf32> -> vector<8x50xf32>
    %79 = arith.addf %78, %7 : vector<8x50xf32>
    %cst_38 = arith.constant dense<0.000000e+00> : vector<8x50xf32>
    %80 = tpu.matmul %72, %3, %cst_38 {dimension_numbers = #tpu.dot_dimension_numbers<[1], [0], [0], [1], [0, 0, 1, 1], [], []>} : vector<8x50xf32>, vector<50x50xf32>, vector<8x50xf32> -> vector<8x50xf32>
    %81 = arith.addf %79, %80 : vector<8x50xf32>
    %82 = math.tanh %81 : vector<8x50xf32>
    %c48 = arith.constant 48 : index
    %c0_39 = arith.constant 0 : index
    %83 = vector.load %arg5[%c48, %c0_39] : memref<64x50xf32, #tpu.memory_space<vmem>>, vector<8x50xf32>
    tpu.vector_store %arg5[%c48, %c0_39], %82 {strides = array<i32>} : memref<64x50xf32, #tpu.memory_space<vmem>>, vector<8x50xf32>,
    %84 = vector.extract_strided_slice %13 {offsets = [56, 0], sizes = [8, 50], strides = [1, 1]} : vector<64x50xf32> to vector<8x50xf32>
    %cst_40 = arith.constant dense<0.000000e+00> : vector<8x50xf32>
    %85 = tpu.matmul %77, %1, %cst_40 {dimension_numbers = #tpu.dot_dimension_numbers<[1], [0], [0], [1], [0, 0, 1, 1], [], []>} : vector<8x50xf32>, vector<50x50xf32>, vector<8x50xf32> -> vector<8x50xf32>
    %86 = arith.addf %84, %85 : vector<8x50xf32>
    %87 = math.tanh %86 : vector<8x50xf32>
    %cst_41 = arith.constant dense<0.000000e+00> : vector<8x50xf32>
    %88 = tpu.matmul %87, %2, %cst_41 {dimension_numbers = #tpu.dot_dimension_numbers<[1], [0], [0], [1], [0, 0, 1, 1], [], []>} : vector<8x50xf32>, vector<50x50xf32>, vector<8x50xf32> -> vector<8x50xf32>
    %89 = arith.addf %88, %7 : vector<8x50xf32>
    %cst_42 = arith.constant dense<0.000000e+00> : vector<8x50xf32>
    %90 = tpu.matmul %82, %3, %cst_42 {dimension_numbers = #tpu.dot_dimension_numbers<[1], [0], [0], [1], [0, 0, 1, 1], [], []>} : vector<8x50xf32>, vector<50x50xf32>, vector<8x50xf32> -> vector<8x50xf32>
    %91 = arith.addf %89, %90 : vector<8x50xf32>
    %92 = math.tanh %91 : vector<8x50xf32>
    %c56 = arith.constant 56 : index
    %c0_43 = arith.constant 0 : index
    %93 = vector.load %arg5[%c56, %c0_43] : memref<64x50xf32, #tpu.memory_space<vmem>>, vector<8x50xf32>
    tpu.vector_store %arg5[%c56, %c0_43], %92 {strides = array<i32>} : memref<64x50xf32, #tpu.memory_space<vmem>>, vector<8x50xf32>,
    %c0_44 = arith.constant 0 : index
    %c0_45 = arith.constant 0 : index
    %94 = vector.load %arg4[%c0_44, %c0_45] : memref<16x50xf32, #tpu.memory_space<vmem>>, vector<8x50xf32>
    tpu.vector_store %arg4[%c0_44, %c0_45], %87 {strides = array<i32>} : memref<16x50xf32, #tpu.memory_space<vmem>>, vector<8x50xf32>,
    %c8_46 = arith.constant 8 : index
    %c0_47 = arith.constant 0 : index
    %95 = vector.load %arg4[%c8_46, %c0_47] : memref<16x50xf32, #tpu.memory_space<vmem>>, vector<8x50xf32>
    tpu.vector_store %arg4[%c8_46, %c0_47], %92 {strides = array<i32>} : memref<16x50xf32, #tpu.memory_space<vmem>>, vector<8x50xf32>,
    %c0_48 = arith.constant 0 : index
    %c0_49 = arith.constant 0 : index
    %96 = vector.load %arg2[%c0_48, %c0_49] : memref<64x128xf32, #tpu.memory_space<vmem>>, vector<50x128xf32>
    %c56_50 = arith.constant 56 : index
    %c0_51 = arith.constant 0 : index
    %97 = vector.load %arg2[%c56_50, %c0_51] : memref<64x128xf32, #tpu.memory_space<vmem>>, vector<1x128xf32>
    %c0_52 = arith.constant 0 : index
    %c0_53 = arith.constant 0 : index
    %98 = vector.load %arg5[%c0_52, %c0_53] : memref<64x50xf32, #tpu.memory_space<vmem>>, vector<64x50xf32>
    %cst_54 = arith.constant dense<0.000000e+00> : vector<64x128xf32>
    %99 = tpu.matmul %98, %96, %cst_54 {dimension_numbers = #tpu.dot_dimension_numbers<[1], [0], [0], [1], [0, 0, 1, 1], [], []>} : vector<64x50xf32>, vector<50x128xf32>, vector<64x128xf32> -> vector<64x128xf32>
    %100 = vector.broadcast %97 : vector<1x128xf32> to vector<64x128xf32>
    %101 = arith.addf %99, %100 : vector<64x128xf32>
    %c0_55 = arith.constant 0 : index
    %c0_56 = arith.constant 0 : index
    %102 = vector.load %arg3[%c0_55, %c0_56] : memref<64x128xf32, #tpu.memory_space<vmem>>, vector<64x128xf32>
    tpu.vector_store %arg3[%c0_55, %c0_56], %101 {strides = array<i32>} : memref<64x128xf32, #tpu.memory_space<vmem>>, vector<64x128xf32>,
    return
  }
}

</mosaic_0001>

<llo_original>
// kernel: rnn_model_forward.1
$region0: #{rnn_model_forward.1}
  #allocation0 [shape = 'u32[]', space=smem, size = 0x4, offset = 0x4, fixed_abs, tag = 'smem constant byte address 0x4 - core index']
  #allocation1 [shape = 'u32[144,128]{1,0:T(1,128)}', space=vmem, size = 0x12000, scoped, tag = 'internal scratch']
  #allocation2 [shape = 'f32[64,50]{1,0:T(8,128)}', space=vmem, size = 0x8000, scoped, tag = 'scratch operand']
  %s0 = inlined_call_operand.vmem [shape: f32[64,10], index: 0, kind: input, shape index: {}]
  %s1 = inlined_call_operand.vmem [shape: f32[208,50], index: 1, kind: input, shape index: {}]
  %s2 = inlined_call_operand.vmem [shape: f32[64,128], index: 2, kind: input, shape index: {}]
  %s3 = inlined_call_operand.vmem [shape: f32[64,128], index: 3, kind: output, shape index: {0}]
  %s4 = inlined_call_operand.vmem [shape: f32[16,50], index: 4, kind: output, shape index: {1}]
  %5 = xla_tuple %s3, %s4
  %s6 = sld [smem:[#allocation0]]
  $region30: #{rnn_model_forward.1} parent=0
    _
  %s8 = ssub.s32 1, %s6
  %s9 = scalar_select 0, %s8, %s6
  // Predicated region
  $region2: #{rnn_model_forward.1} parent=0 // pred_check
    _
  $region3: #{rnn_model_forward.1} parent=0 // pred_check_branch
    %11 = sbr.rel (0) target = $region5
  $region4: #{rnn_model_forward.1} parent=0 // pred_region
    _
  $region5: #{rnn_model_forward.1} parent=0 // pred_fallthru
    _
  // Predicated region
  $region6: #{rnn_model_forward.1} parent=0 // pred_check
    _
  $region7: #{rnn_model_forward.1} parent=0 // pred_check_branch
    %13 = sbr.rel (0) target = $region9
  $region8: #{rnn_model_forward.1} parent=0 // pred_region
    _
  $region9: #{rnn_model_forward.1} parent=0 // pred_fallthru
    _
  // Predicated region
  $region10: #{rnn_model_forward.1} parent=0 // pred_check
    _
  $region11: #{rnn_model_forward.1} parent=0 // pred_check_branch
    %15 = sbr.rel (0) target = $region13
  $region12: #{rnn_model_forward.1} parent=0 // pred_region
    _
  $region13: #{rnn_model_forward.1} parent=0 // pred_fallthru
    _
  %v16 = vld [vmem:[%s1] sm:$0xff]
  %v17 = vld [vmem:[%s1 + $0x8] sm:$0x3]
  %v18 = vld [vmem:[%s1 + $0x10] sm:$0xff]
  %v19 = vld [vmem:[%s1 + $0x18] sm:$0xff]
  %v20 = vld [vmem:[%s1 + $0x20] sm:$0xff]
  %v21 = vld [vmem:[%s1 + $0x28] sm:$0xff]
  %v22 = vld [vmem:[%s1 + $0x30] sm:$0xff]
  %v23 = vld [vmem:[%s1 + $0x38] sm:$0xff]
  %v24 = vld [vmem:[%s1 + $0x40] sm:$0x3]
  %v25 = vld [vmem:[%s1 + $0x48] sm:$0xff]
  %v26 = vld [vmem:[%s1 + $0x50] sm:$0xff]
  %v27 = vld [vmem:[%s1 + $0x58] sm:$0xff]
  %v28 = vld [vmem:[%s1 + $0x60] sm:$0xff]
  %v29 = vld [vmem:[%s1 + $0x68] sm:$0xff]
  %v30 = vld [vmem:[%s1 + $0x70] sm:$0xff]
  %v31 = vld [vmem:[%s1 + $0x78] sm:$0x3]
  %v32 = vld [vmem:[%s1 + $0x80] sm:$0xff]
  %v33 = vld [vmem:[%s1 + $0x88] sm:$0xff]
  %v34 = vld [vmem:[%s1 + $0x90] sm:$0xff]
  %v35 = vld [vmem:[%s1 + $0x98] sm:$0xff]
  %v36 = vld [vmem:[%s1 + $0xa0] sm:$0xff]
  %v37 = vld [vmem:[%s1 + $0xa8] sm:$0xff]
  %v38 = vld [vmem:[%s1 + $0xb0] sm:$0x3]
  %v39 = vld [vmem:[%s1 + $0xb8] sm:$0x1]
  %v40 = vld [vmem:[%s1 + $0xb9] sm:$0x1]
  %v41 = vlaneseq
  %v42 = vshrl.u32 %v41, 7
  %v43 = vsub.s32 0, %v42
  %v44 = vrot.slane %v40, %v43
  %v45 = vld [vmem:[%s1 + $0xc0] sm:$0xff]
  %v46 = vld [vmem:[%s1 + $0xc8] sm:$0xff]
  %v47 = vld [vmem:[%s0] sm:$0xff]
  %v48 = vld [vmem:[%s0 + $0x8] sm:$0xff]
  %v49 = vld [vmem:[%s0 + $0x10] sm:$0xff]
  %v50 = vld [vmem:[%s0 + $0x18] sm:$0xff]
  %v51 = vld [vmem:[%s0 + $0x20] sm:$0xff]
  %v52 = vld [vmem:[%s0 + $0x28] sm:$0xff]
  %v53 = vld [vmem:[%s0 + $0x30] sm:$0xff]
  %v54 = vld [vmem:[%s0 + $0x38] sm:$0xff]
  %v55 = vlaneseq
  %v56 = vshrl.u32 %v55, 7
  %v57 = vsub.s32 0, %v56
  %v58 = vrot.slane %v39, %v57
  %vm59 = vcmask 80896
  %v61 = vsel %vm59, %v47, 0
  %v64 = vsel %vm59, %v48, 0
  %v67 = vsel %vm59, %v49, 0
  %v70 = vsel %vm59, %v50, 0
  %v73 = vsel %vm59, %v51, 0
  %v76 = vsel %vm59, %v52, 0
  %v79 = vsel %vm59, %v53, 0
  %v82 = vsel %vm59, %v54, 0
  %vm84 = vcmask 1041408
  %v86 = vsel %vm84, %v17, 0
  %88 = vmatprep.subr.mxu0 0.0
  %89 = vmatpush1.msra.mxu0 %v16
  %90 = vmatprep.subr.mxu0 0.0
  %91 = vmatpush1.msra.mxu0 %v86
  %92 = vmatprep.subr.mxu0 0.0
  %93 = vmatpush1.msra.mxu0 0.0
  %94 = vmatprep.subr.mxu0 0.0
  %95 = vmatpush1.msra.mxu0 0.0
  %96 = vmatprep.subr.mxu0 0.0
  %97 = vmatpush1.msra.mxu0 0.0
  %98 = vmatprep.subr.mxu0 0.0
  %99 = vmatpush1.msra.mxu0 0.0
  %100 = vmatprep.subr.mxu0 0.0
  %101 = vmatpush1.msra.mxu0 0.0
  %102 = vmatprep.subr.mxu0 0.0
  %103 = vmatpush1.msra.mxu0 0.0
  %104 = vmatprep.subr.mxu0 0.0
  %105 = vmatpush1.msra.mxu0 0.0
  %106 = vmatprep.subr.mxu0 0.0
  %107 = vmatpush1.msra.mxu0 0.0
  %108 = vmatprep.subr.mxu0 0.0
  %109 = vmatpush1.msra.mxu0 0.0
  %110 = vmatprep.subr.mxu0 0.0
  %111 = vmatpush1.msra.mxu0 0.0
  %112 = vmatprep.subr.mxu0 0.0
  %113 = vmatpush1.msra.mxu0 0.0
  %114 = vmatprep.subr.mxu0 0.0
  %115 = vmatpush1.msra.mxu0 0.0
  %116 = vmatprep.subr.mxu0 0.0
  %117 = vmatpush1.msra.mxu0 0.0
  %118 = vmatprep.subr.mxu0 0.0
  %119 = vmatpush1.msra.mxu0 0.0
  %120 = vmatprep.subr.mxu0 0.0
  %121 = vmatpush1.msra.mxu0 0.0
  %122 = vmatprep.subr.mxu0 0.0
  %123 = vmatpush1.msra.mxu0 0.0
  %124 = vmatprep.subr.mxu0 0.0
  %125 = vmatpush1.msra.mxu0 0.0
  %126 = vmatprep.subr.mxu0 0.0
  %127 = vmatpush1.msra.mxu0 0.0
  %128 = vmatprep.subr.mxu0 0.0
  %129 = vmatpush1.msra.mxu0 0.0
  %130 = vmatprep.subr.mxu0 0.0
  %131 = vmatpush1.msra.mxu0 0.0
  %132 = vmatprep.subr.mxu0 0.0
  %133 = vmatpush1.msra.mxu0 0.0
  %134 = vmatprep.subr.mxu0 0.0
  %135 = vmatpush1.msra.mxu0 0.0
  %136 = vmatprep.subr.mxu0 0.0
  %137 = vmatpush1.msra.mxu0 0.0
  %138 = vmatprep.subr.mxu0 0.0
  %139 = vmatpush1.msra.mxu0 0.0
  %140 = vmatprep.subr.mxu0 0.0
  %141 = vmatpush1.msra.mxu0 0.0
  %142 = vmatprep.subr.mxu0 0.0
  %143 = vmatpush1.msra.mxu0 0.0
  %144 = vmatprep.subr.mxu0 0.0
  %145 = vmatpush1.msra.mxu0 0.0
  %146 = vmatprep.subr.mxu0 0.0
  %147 = vmatpush1.msra.mxu0 0.0
  %148 = vmatprep.subr.mxu0 0.0
  %149 = vmatpush1.msra.mxu0 0.0
  %150 = vmatprep.subr.mxu0 0.0
  %151 = vmatpush1.msra.mxu0 0.0
  %152 = vmatprep.mubr.f32.mxu0 0.0
  %153 = vmatmul.mubr.f32.gmra.mrb[0].mxu0 %v61
  %v154 = vpop.f32.mrb[0].mxu0
  %v155 = vadd.f32 %v58, %v154
  %v156 = vpop.f32.mrb[0].mxu0
  %157 = vmatprep.mubr.f32.mxu0 0.0
  %158 = vmatmul.mubr.f32.gmra.mrb[0].mxu0 %v64
  %v159 = vpop.f32.mrb[0].mxu0
  %v160 = vadd.f32 %v58, %v159
  %v161 = vpop.f32.mrb[0].mxu0
  %162 = vmatprep.mubr.f32.mxu0 0.0
  %163 = vmatmul.mubr.f32.gmra.mrb[0].mxu0 %v67
  %v164 = vpop.f32.mrb[0].mxu0
  %v165 = vadd.f32 %v58, %v164
  %v166 = vpop.f32.mrb[0].mxu0
  %167 = vmatprep.mubr.f32.mxu0 0.0
  %168 = vmatmul.mubr.f32.gmra.mrb[0].mxu0 %v70
  %v169 = vpop.f32.mrb[0].mxu0
  %v170 = vadd.f32 %v58, %v169
  %v171 = vpop.f32.mrb[0].mxu0
  %172 = vmatprep.mubr.f32.mxu0 0.0
  %173 = vmatmul.mubr.f32.gmra.mrb[0].mxu0 %v73
  %v174 = vpop.f32.mrb[0].mxu0
  %v175 = vadd.f32 %v58, %v174
  %v176 = vpop.f32.mrb[0].mxu0
  %177 = vmatprep.mubr.f32.mxu0 0.0
  %178 = vmatmul.mubr.f32.gmra.mrb[0].mxu0 %v76
  %v179 = vpop.f32.mrb[0].mxu0
  %v180 = vadd.f32 %v58, %v179
  %v181 = vpop.f32.mrb[0].mxu0
  %182 = vmatprep.mubr.f32.mxu0 0.0
  %183 = vmatmul.mubr.f32.gmra.mrb[0].mxu0 %v79
  %v184 = vpop.f32.mrb[0].mxu0
  %v185 = vadd.f32 %v58, %v184
  %v186 = vpop.f32.mrb[0].mxu0
  %187 = vmatprep.mubr.f32.mxu0 0.0
  %188 = vmatmul.mubr.f32.gmra.mrb[0].mxu0 %v82
  %v189 = vpop.f32.mrb[0].mxu0
  %v190 = vadd.f32 %v58, %v189
  %v191 = vpop.f32.mrb[0].mxu0
  %192 = vdwg.mxu0
  %vm193 = vcmask 408576
  %v195 = vsel %vm193, %v45, 0
  %v198 = vsel %vm84, %v24, 0
  %200 = vmatprep.subr.mxu0 0.0
  %201 = vmatpush1.msra.mxu0 %v18
  %202 = vmatprep.subr.mxu0 0.0
  %203 = vmatpush1.msra.mxu0 %v19
  %204 = vmatprep.subr.mxu0 0.0
  %205 = vmatpush1.msra.mxu0 %v20
  %206 = vmatprep.subr.mxu0 0.0
  %207 = vmatpush1.msra.mxu0 %v21
  %208 = vmatprep.subr.mxu0 0.0
  %209 = vmatpush1.msra.mxu0 %v22
  %210 = vmatprep.subr.mxu0 0.0
  %211 = vmatpush1.msra.mxu0 %v23
  %212 = vmatprep.subr.mxu0 0.0
  %213 = vmatpush1.msra.mxu0 %v198
  %214 = vmatprep.subr.mxu0 0.0
  %215 = vmatpush1.msra.mxu0 0.0
  %216 = vmatprep.subr.mxu0 0.0
  %217 = vmatpush1.msra.mxu0 0.0
  %218 = vmatprep.subr.mxu0 0.0
  %219 = vmatpush1.msra.mxu0 0.0
  %220 = vmatprep.subr.mxu0 0.0
  %221 = vmatpush1.msra.mxu0 0.0
  %222 = vmatprep.subr.mxu0 0.0
  %223 = vmatpush1.msra.mxu0 0.0
  %224 = vmatprep.subr.mxu0 0.0
  %225 = vmatpush1.msra.mxu0 0.0
  %226 = vmatprep.subr.mxu0 0.0
  %227 = vmatpush1.msra.mxu0 0.0
  %228 = vmatprep.subr.mxu0 0.0
  %229 = vmatpush1.msra.mxu0 0.0
  %230 = vmatprep.subr.mxu0 0.0
  %231 = vmatpush1.msra.mxu0 0.0
  %232 = vmatprep.subr.mxu0 0.0
  %233 = vmatpush1.msra.mxu0 0.0
  %234 = vmatprep.subr.mxu0 0.0
  %235 = vmatpush1.msra.mxu0 0.0
  %236 = vmatprep.subr.mxu0 0.0
  %237 = vmatpush1.msra.mxu0 0.0
  %238 = vmatprep.subr.mxu0 0.0
  %239 = vmatpush1.msra.mxu0 0.0
  %240 = vmatprep.subr.mxu0 0.0
  %241 = vmatpush1.msra.mxu0 0.0
  %242 = vmatprep.subr.mxu0 0.0
  %243 = vmatpush1.msra.mxu0 0.0
  %244 = vmatprep.subr.mxu0 0.0
  %245 = vmatpush1.msra.mxu0 0.0
  %246 = vmatprep.subr.mxu0 0.0
  %247 = vmatpush1.msra.mxu0 0.0
  %248 = vmatprep.subr.mxu0 0.0
  %249 = vmatpush1.msra.mxu0 0.0
  %250 = vmatprep.subr.mxu0 0.0
  %251 = vmatpush1.msra.mxu0 0.0
  %252 = vmatprep.subr.mxu0 0.0
  %253 = vmatpush1.msra.mxu0 0.0
  %254 = vmatprep.subr.mxu0 0.0
  %255 = vmatpush1.msra.mxu0 0.0
  %256 = vmatprep.subr.mxu0 0.0
  %257 = vmatpush1.msra.mxu0 0.0
  %258 = vmatprep.subr.mxu0 0.0
  %259 = vmatpush1.msra.mxu0 0.0
  %260 = vmatprep.subr.mxu0 0.0
  %261 = vmatpush1.msra.mxu0 0.0
  %262 = vmatprep.subr.mxu0 0.0
  %263 = vmatpush1.msra.mxu0 0.0
  %264 = vmatprep.mubr.f32.mxu0 0.0
  %265 = vmatmul.mubr.f32.gmra.mrb[0].mxu0 %v195
  %v266 = vpop.f32.mrb[0].mxu0
  %v267 = vadd.f32 0.0, %v266
  %v268 = vpop.f32.mrb[0].mxu0
  %269 = vdwg.mxu0
  %v270 = vadd.f32 %v155, %v267
  %v271 = vtanh.pop %v270
  %v273 = vsel %vm193, %v271, 0
  %v276 = vsel %vm84, %v31, 0
  %278 = vmatprep.subr.mxu0 0.0
  %279 = vmatpush1.msra.mxu0 %v25
  %280 = vmatprep.subr.mxu0 0.0
  %281 = vmatpush1.msra.mxu0 %v26
  %282 = vmatprep.subr.mxu0 0.0
  %283 = vmatpush1.msra.mxu0 %v27
  %284 = vmatprep.subr.mxu0 0.0
  %285 = vmatpush1.msra.mxu0 %v28
  %286 = vmatprep.subr.mxu0 0.0
  %287 = vmatpush1.msra.mxu0 %v29
  %288 = vmatprep.subr.mxu0 0.0
  %289 = vmatpush1.msra.mxu0 %v30
  %290 = vmatprep.subr.mxu0 0.0
  %291 = vmatpush1.msra.mxu0 %v276
  %292 = vmatprep.subr.mxu0 0.0
  %293 = vmatpush1.msra.mxu0 0.0
  %294 = vmatprep.subr.mxu0 0.0
  %295 = vmatpush1.msra.mxu0 0.0
  %296 = vmatprep.subr.mxu0 0.0
  %297 = vmatpush1.msra.mxu0 0.0
  %298 = vmatprep.subr.mxu0 0.0
  %299 = vmatpush1.msra.mxu0 0.0
  %300 = vmatprep.subr.mxu0 0.0
  %301 = vmatpush1.msra.mxu0 0.0
  %302 = vmatprep.subr.mxu0 0.0
  %303 = vmatpush1.msra.mxu0 0.0
  %304 = vmatprep.subr.mxu0 0.0
  %305 = vmatpush1.msra.mxu0 0.0
  %306 = vmatprep.subr.mxu0 0.0
  %307 = vmatpush1.msra.mxu0 0.0
  %308 = vmatprep.subr.mxu0 0.0
  %309 = vmatpush1.msra.mxu0 0.0
  %310 = vmatprep.subr.mxu0 0.0
  %311 = vmatpush1.msra.mxu0 0.0
  %312 = vmatprep.subr.mxu0 0.0
  %313 = vmatpush1.msra.mxu0 0.0
  %314 = vmatprep.subr.mxu0 0.0
  %315 = vmatpush1.msra.mxu0 0.0
  %316 = vmatprep.subr.mxu0 0.0
  %317 = vmatpush1.msra.mxu0 0.0
  %318 = vmatprep.subr.mxu0 0.0
  %319 = vmatpush1.msra.mxu0 0.0
  %320 = vmatprep.subr.mxu0 0.0
  %321 = vmatpush1.msra.mxu0 0.0
  %322 = vmatprep.subr.mxu0 0.0
  %323 = vmatpush1.msra.mxu0 0.0
  %324 = vmatprep.subr.mxu0 0.0
  %325 = vmatpush1.msra.mxu0 0.0
  %326 = vmatprep.subr.mxu0 0.0
  %327 = vmatpush1.msra.mxu0 0.0
  %328 = vmatprep.subr.mxu0 0.0
  %329 = vmatpush1.msra.mxu0 0.0
  %330 = vmatprep.subr.mxu0 0.0
  %331 = vmatpush1.msra.mxu0 0.0
  %332 = vmatprep.subr.mxu0 0.0
  %333 = vmatpush1.msra.mxu0 0.0
  %334 = vmatprep.subr.mxu0 0.0
  %335 = vmatpush1.msra.mxu0 0.0
  %336 = vmatprep.subr.mxu0 0.0
  %337 = vmatpush1.msra.mxu0 0.0
  %338 = vmatprep.subr.mxu0 0.0
  %339 = vmatpush1.msra.mxu0 0.0
  %340 = vmatprep.subr.mxu0 0.0
  %341 = vmatpush1.msra.mxu0 0.0
  %342 = vmatprep.mubr.f32.mxu0 0.0
  %343 = vmatmul.mubr.f32.gmra.mrb[0].mxu0 %v273
  %v344 = vpop.f32.mrb[0].mxu0
  %v345 = vadd.f32 %v44, %v344
  %v346 = vpop.f32.mrb[0].mxu0
  %347 = vdwg.mxu0
  %v349 = vsel %vm193, %v46, 0
  %v352 = vsel %vm84, %v38, 0
  %354 = vmatprep.subr.mxu0 0.0
  %355 = vmatpush1.msra.mxu0 %v32
  %356 = vmatprep.subr.mxu0 0.0
  %357 = vmatpush1.msra.mxu0 %v33
  %358 = vmatprep.subr.mxu0 0.0
  %359 = vmatpush1.msra.mxu0 %v34
  %360 = vmatprep.subr.mxu0 0.0
  %361 = vmatpush1.msra.mxu0 %v35
  %362 = vmatprep.subr.mxu0 0.0
  %363 = vmatpush1.msra.mxu0 %v36
  %364 = vmatprep.subr.mxu0 0.0
  %365 = vmatpush1.msra.mxu0 %v37
  %366 = vmatprep.subr.mxu0 0.0
  %367 = vmatpush1.msra.mxu0 %v352
  %368 = vmatprep.subr.mxu0 0.0
  %369 = vmatpush1.msra.mxu0 0.0
  %370 = vmatprep.subr.mxu0 0.0
  %371 = vmatpush1.msra.mxu0 0.0
  %372 = vmatprep.subr.mxu0 0.0
  %373 = vmatpush1.msra.mxu0 0.0
  %374 = vmatprep.subr.mxu0 0.0
  %375 = vmatpush1.msra.mxu0 0.0
  %376 = vmatprep.subr.mxu0 0.0
  %377 = vmatpush1.msra.mxu0 0.0
  %378 = vmatprep.subr.mxu0 0.0
  %379 = vmatpush1.msra.mxu0 0.0
  %380 = vmatprep.subr.mxu0 0.0
  %381 = vmatpush1.msra.mxu0 0.0
  %382 = vmatprep.subr.mxu0 0.0
  %383 = vmatpush1.msra.mxu0 0.0
  %384 = vmatprep.subr.mxu0 0.0
  %385 = vmatpush1.msra.mxu0 0.0
  %386 = vmatprep.subr.mxu0 0.0
  %387 = vmatpush1.msra.mxu0 0.0
  %388 = vmatprep.subr.mxu0 0.0
  %389 = vmatpush1.msra.mxu0 0.0
  %390 = vmatprep.subr.mxu0 0.0
  %391 = vmatpush1.msra.mxu0 0.0
  %392 = vmatprep.subr.mxu0 0.0
  %393 = vmatpush1.msra.mxu0 0.0
  %394 = vmatprep.subr.mxu0 0.0
  %395 = vmatpush1.msra.mxu0 0.0
  %396 = vmatprep.subr.mxu0 0.0
  %397 = vmatpush1.msra.mxu0 0.0
  %398 = vmatprep.subr.mxu0 0.0
  %399 = vmatpush1.msra.mxu0 0.0
  %400 = vmatprep.subr.mxu0 0.0
  %401 = vmatpush1.msra.mxu0 0.0
  %402 = vmatprep.subr.mxu0 0.0
  %403 = vmatpush1.msra.mxu0 0.0
  %404 = vmatprep.subr.mxu0 0.0
  %405 = vmatpush1.msra.mxu0 0.0
  %406 = vmatprep.subr.mxu0 0.0
  %407 = vmatpush1.msra.mxu0 0.0
  %408 = vmatprep.subr.mxu0 0.0
  %409 = vmatpush1.msra.mxu0 0.0
  %410 = vmatprep.subr.mxu0 0.0
  %411 = vmatpush1.msra.mxu0 0.0
  %412 = vmatprep.subr.mxu0 0.0
  %413 = vmatpush1.msra.mxu0 0.0
  %414 = vmatprep.subr.mxu0 0.0
  %415 = vmatpush1.msra.mxu0 0.0
  %416 = vmatprep.subr.mxu0 0.0
  %417 = vmatpush1.msra.mxu0 0.0
  %418 = vmatprep.mubr.f32.mxu0 0.0
  %419 = vmatmul.mubr.f32.gmra.mrb[0].mxu0 %v349
  %v420 = vpop.f32.mrb[0].mxu0
  %v421 = vadd.f32 0.0, %v420
  %v422 = vpop.f32.mrb[0].mxu0
  %423 = vdwg.mxu0
  %v424 = vadd.f32 %v345, %v421
  %v425 = vtanh.pop %v424
  %426 = vst.msk [vmem:[#allocation2] sm:$0xff] %vm193, %v425
  %427 = vmatprep.subr.mxu0 0.0
  %428 = vmatpush1.msra.mxu0 %v18
  %429 = vmatprep.subr.mxu0 0.0
  %430 = vmatpush1.msra.mxu0 %v19
  %431 = vmatprep.subr.mxu0 0.0
  %432 = vmatpush1.msra.mxu0 %v20
  %433 = vmatprep.subr.mxu0 0.0
  %434 = vmatpush1.msra.mxu0 %v21
  %435 = vmatprep.subr.mxu0 0.0
  %436 = vmatpush1.msra.mxu0 %v22
  %437 = vmatprep.subr.mxu0 0.0
  %438 = vmatpush1.msra.mxu0 %v23
  %439 = vmatprep.subr.mxu0 0.0
  %440 = vmatpush1.msra.mxu0 %v198
  %441 = vmatprep.subr.mxu0 0.0
  %442 = vmatpush1.msra.mxu0 0.0
  %443 = vmatprep.subr.mxu0 0.0
  %444 = vmatpush1.msra.mxu0 0.0
  %445 = vmatprep.subr.mxu0 0.0
  %446 = vmatpush1.msra.mxu0 0.0
  %447 = vmatprep.subr.mxu0 0.0
  %448 = vmatpush1.msra.mxu0 0.0
  %449 = vmatprep.subr.mxu0 0.0
  %450 = vmatpush1.msra.mxu0 0.0
  %451 = vmatprep.subr.mxu0 0.0
  %452 = vmatpush1.msra.mxu0 0.0
  %453 = vmatprep.subr.mxu0 0.0
  %454 = vmatpush1.msra.mxu0 0.0
  %455 = vmatprep.subr.mxu0 0.0
  %456 = vmatpush1.msra.mxu0 0.0
  %457 = vmatprep.subr.mxu0 0.0
  %458 = vmatpush1.msra.mxu0 0.0
  %459 = vmatprep.subr.mxu0 0.0
  %460 = vmatpush1.msra.mxu0 0.0
  %461 = vmatprep.subr.mxu0 0.0
  %462 = vmatpush1.msra.mxu0 0.0
  %463 = vmatprep.subr.mxu0 0.0
  %464 = vmatpush1.msra.mxu0 0.0
  %465 = vmatprep.subr.mxu0 0.0
  %466 = vmatpush1.msra.mxu0 0.0
  %467 = vmatprep.subr.mxu0 0.0
  %468 = vmatpush1.msra.mxu0 0.0
  %469 = vmatprep.subr.mxu0 0.0
  %470 = vmatpush1.msra.mxu0 0.0
  %471 = vmatprep.subr.mxu0 0.0
  %472 = vmatpush1.msra.mxu0 0.0
  %473 = vmatprep.subr.mxu0 0.0
  %474 = vmatpush1.msra.mxu0 0.0
  %475 = vmatprep.subr.mxu0 0.0
  %476 = vmatpush1.msra.mxu0 0.0
  %477 = vmatprep.subr.mxu0 0.0
  %478 = vmatpush1.msra.mxu0 0.0
  %479 = vmatprep.subr.mxu0 0.0
  %480 = vmatpush1.msra.mxu0 0.0
  %481 = vmatprep.subr.mxu0 0.0
  %482 = vmatpush1.msra.mxu0 0.0
  %483 = vmatprep.subr.mxu0 0.0
  %484 = vmatpush1.msra.mxu0 0.0
  %485 = vmatprep.subr.mxu0 0.0
  %486 = vmatpush1.msra.mxu0 0.0
  %487 = vmatprep.subr.mxu0 0.0
  %488 = vmatpush1.msra.mxu0 0.0
  %489 = vmatprep.subr.mxu0 0.0
  %490 = vmatpush1.msra.mxu0 0.0
  %491 = vmatprep.mubr.f32.mxu0 0.0
  %492 = vmatmul.mubr.f32.gmra.mrb[0].mxu0 %v273
  %v493 = vpop.f32.mrb[0].mxu0
  %v494 = vadd.f32 0.0, %v493
  %v495 = vpop.f32.mrb[0].mxu0
  %496 = vdwg.mxu0
  %v497 = vadd.f32 %v160, %v494
  %v498 = vtanh.pop %v497
  %v500 = vsel %vm193, %v498, 0
  %502 = vmatprep.subr.mxu0 0.0
  %503 = vmatpush1.msra.mxu0 %v25
  %504 = vmatprep.subr.mxu0 0.0
  %505 = vmatpush1.msra.mxu0 %v26
  %506 = vmatprep.subr.mxu0 0.0
  %507 = vmatpush1.msra.mxu0 %v27
  %508 = vmatprep.subr.mxu0 0.0
  %509 = vmatpush1.msra.mxu0 %v28
  %510 = vmatprep.subr.mxu0 0.0
  %511 = vmatpush1.msra.mxu0 %v29
  %512 = vmatprep.subr.mxu0 0.0
  %513 = vmatpush1.msra.mxu0 %v30
  %514 = vmatprep.subr.mxu0 0.0
  %515 = vmatpush1.msra.mxu0 %v276
  %516 = vmatprep.subr.mxu0 0.0
  %517 = vmatpush1.msra.mxu0 0.0
  %518 = vmatprep.subr.mxu0 0.0
  %519 = vmatpush1.msra.mxu0 0.0
  %520 = vmatprep.subr.mxu0 0.0
  %521 = vmatpush1.msra.mxu0 0.0
  %522 = vmatprep.subr.mxu0 0.0
  %523 = vmatpush1.msra.mxu0 0.0
  %524 = vmatprep.subr.mxu0 0.0
  %525 = vmatpush1.msra.mxu0 0.0
  %526 = vmatprep.subr.mxu0 0.0
  %527 = vmatpush1.msra.mxu0 0.0
  %528 = vmatprep.subr.mxu0 0.0
  %529 = vmatpush1.msra.mxu0 0.0
  %530 = vmatprep.subr.mxu0 0.0
  %531 = vmatpush1.msra.mxu0 0.0
  %532 = vmatprep.subr.mxu0 0.0
  %533 = vmatpush1.msra.mxu0 0.0
  %534 = vmatprep.subr.mxu0 0.0
  %535 = vmatpush1.msra.mxu0 0.0
  %536 = vmatprep.subr.mxu0 0.0
  %537 = vmatpush1.msra.mxu0 0.0
  %538 = vmatprep.subr.mxu0 0.0
  %539 = vmatpush1.msra.mxu0 0.0
  %540 = vmatprep.subr.mxu0 0.0
  %541 = vmatpush1.msra.mxu0 0.0
  %542 = vmatprep.subr.mxu0 0.0
  %543 = vmatpush1.msra.mxu0 0.0
  %544 = vmatprep.subr.mxu0 0.0
  %545 = vmatpush1.msra.mxu0 0.0
  %546 = vmatprep.subr.mxu0 0.0
  %547 = vmatpush1.msra.mxu0 0.0
  %548 = vmatprep.subr.mxu0 0.0
  %549 = vmatpush1.msra.mxu0 0.0
  %550 = vmatprep.subr.mxu0 0.0
  %551 = vmatpush1.msra.mxu0 0.0
  %552 = vmatprep.subr.mxu0 0.0
  %553 = vmatpush1.msra.mxu0 0.0
  %554 = vmatprep.subr.mxu0 0.0
  %555 = vmatpush1.msra.mxu0 0.0
  %556 = vmatprep.subr.mxu0 0.0
  %557 = vmatpush1.msra.mxu0 0.0
  %558 = vmatprep.subr.mxu0 0.0
  %559 = vmatpush1.msra.mxu0 0.0
  %560 = vmatprep.subr.mxu0 0.0
  %561 = vmatpush1.msra.mxu0 0.0
  %562 = vmatprep.subr.mxu0 0.0
  %563 = vmatpush1.msra.mxu0 0.0
  %564 = vmatprep.subr.mxu0 0.0
  %565 = vmatpush1.msra.mxu0 0.0
  %566 = vmatprep.mubr.f32.mxu0 0.0
  %567 = vmatmul.mubr.f32.gmra.mrb[0].mxu0 %v500
  %v568 = vpop.f32.mrb[0].mxu0
  %v569 = vadd.f32 %v44, %v568
  %v570 = vpop.f32.mrb[0].mxu0
  %571 = vdwg.mxu0
  %v573 = vsel %vm193, %v425, 0
  %575 = vmatprep.subr.mxu0 0.0
  %576 = vmatpush1.msra.mxu0 %v32
  %577 = vmatprep.subr.mxu0 0.0
  %578 = vmatpush1.msra.mxu0 %v33
  %579 = vmatprep.subr.mxu0 0.0
  %580 = vmatpush1.msra.mxu0 %v34
  %581 = vmatprep.subr.mxu0 0.0
  %582 = vmatpush1.msra.mxu0 %v35
  %583 = vmatprep.subr.mxu0 0.0
  %584 = vmatpush1.msra.mxu0 %v36
  %585 = vmatprep.subr.mxu0 0.0
  %586 = vmatpush1.msra.mxu0 %v37
  %587 = vmatprep.subr.mxu0 0.0
  %588 = vmatpush1.msra.mxu0 %v352
  %589 = vmatprep.subr.mxu0 0.0
  %590 = vmatpush1.msra.mxu0 0.0
  %591 = vmatprep.subr.mxu0 0.0
  %592 = vmatpush1.msra.mxu0 0.0
  %593 = vmatprep.subr.mxu0 0.0
  %594 = vmatpush1.msra.mxu0 0.0
  %595 = vmatprep.subr.mxu0 0.0
  %596 = vmatpush1.msra.mxu0 0.0
  %597 = vmatprep.subr.mxu0 0.0
  %598 = vmatpush1.msra.mxu0 0.0
  %599 = vmatprep.subr.mxu0 0.0
  %600 = vmatpush1.msra.mxu0 0.0
  %601 = vmatprep.subr.mxu0 0.0
  %602 = vmatpush1.msra.mxu0 0.0
  %603 = vmatprep.subr.mxu0 0.0
  %604 = vmatpush1.msra.mxu0 0.0
  %605 = vmatprep.subr.mxu0 0.0
  %606 = vmatpush1.msra.mxu0 0.0
  %607 = vmatprep.subr.mxu0 0.0
  %608 = vmatpush1.msra.mxu0 0.0
  %609 = vmatprep.subr.mxu0 0.0
  %610 = vmatpush1.msra.mxu0 0.0
  %611 = vmatprep.subr.mxu0 0.0
  %612 = vmatpush1.msra.mxu0 0.0
  %613 = vmatprep.subr.mxu0 0.0
  %614 = vmatpush1.msra.mxu0 0.0
  %615 = vmatprep.subr.mxu0 0.0
  %616 = vmatpush1.msra.mxu0 0.0
  %617 = vmatprep.subr.mxu0 0.0
  %618 = vmatpush1.msra.mxu0 0.0
  %619 = vmatprep.subr.mxu0 0.0
  %620 = vmatpush1.msra.mxu0 0.0
  %621 = vmatprep.subr.mxu0 0.0
  %622 = vmatpush1.msra.mxu0 0.0
  %623 = vmatprep.subr.mxu0 0.0
  %624 = vmatpush1.msra.mxu0 0.0
  %625 = vmatprep.subr.mxu0 0.0
  %626 = vmatpush1.msra.mxu0 0.0
  %627 = vmatprep.subr.mxu0 0.0
  %628 = vmatpush1.msra.mxu0 0.0
  %629 = vmatprep.subr.mxu0 0.0
  %630 = vmatpush1.msra.mxu0 0.0
  %631 = vmatprep.subr.mxu0 0.0
  %632 = vmatpush1.msra.mxu0 0.0
  %633 = vmatprep.subr.mxu0 0.0
  %634 = vmatpush1.msra.mxu0 0.0
  %635 = vmatprep.subr.mxu0 0.0
  %636 = vmatpush1.msra.mxu0 0.0
  %637 = vmatprep.subr.mxu0 0.0
  %638 = vmatpush1.msra.mxu0 0.0
  %639 = vmatprep.mubr.f32.mxu0 0.0
  %640 = vmatmul.mubr.f32.gmra.mrb[0].mxu0 %v573
  %v641 = vpop.f32.mrb[0].mxu0
  %v642 = vadd.f32 0.0, %v641
  %v643 = vpop.f32.mrb[0].mxu0
  %644 = vdwg.mxu0
  %v645 = vadd.f32 %v569, %v642
  %v646 = vtanh.pop %v645
  %647 = vst.msk [vmem:[#allocation2 + $0x8] sm:$0xff] %vm193, %v646
  %648 = vmatprep.subr.mxu0 0.0
  %649 = vmatpush1.msra.mxu0 %v18
  %650 = vmatprep.subr.mxu0 0.0
  %651 = vmatpush1.msra.mxu0 %v19
  %652 = vmatprep.subr.mxu0 0.0
  %653 = vmatpush1.msra.mxu0 %v20
  %654 = vmatprep.subr.mxu0 0.0
  %655 = vmatpush1.msra.mxu0 %v21
  %656 = vmatprep.subr.mxu0 0.0
  %657 = vmatpush1.msra.mxu0 %v22
  %658 = vmatprep.subr.mxu0 0.0
  %659 = vmatpush1.msra.mxu0 %v23
  %660 = vmatprep.subr.mxu0 0.0
  %661 = vmatpush1.msra.mxu0 %v198
  %662 = vmatprep.subr.mxu0 0.0
  %663 = vmatpush1.msra.mxu0 0.0
  %664 = vmatprep.subr.mxu0 0.0
  %665 = vmatpush1.msra.mxu0 0.0
  %666 = vmatprep.subr.mxu0 0.0
  %667 = vmatpush1.msra.mxu0 0.0
  %668 = vmatprep.subr.mxu0 0.0
  %669 = vmatpush1.msra.mxu0 0.0
  %670 = vmatprep.subr.mxu0 0.0
  %671 = vmatpush1.msra.mxu0 0.0
  %672 = vmatprep.subr.mxu0 0.0
  %673 = vmatpush1.msra.mxu0 0.0
  %674 = vmatprep.subr.mxu0 0.0
  %675 = vmatpush1.msra.mxu0 0.0
  %676 = vmatprep.subr.mxu0 0.0
  %677 = vmatpush1.msra.mxu0 0.0
  %678 = vmatprep.subr.mxu0 0.0
  %679 = vmatpush1.msra.mxu0 0.0
  %680 = vmatprep.subr.mxu0 0.0
  %681 = vmatpush1.msra.mxu0 0.0
  %682 = vmatprep.subr.mxu0 0.0
  %683 = vmatpush1.msra.mxu0 0.0
  %684 = vmatprep.subr.mxu0 0.0
  %685 = vmatpush1.msra.mxu0 0.0
  %686 = vmatprep.subr.mxu0 0.0
  %687 = vmatpush1.msra.mxu0 0.0
  %688 = vmatprep.subr.mxu0 0.0
  %689 = vmatpush1.msra.mxu0 0.0
  %690 = vmatprep.subr.mxu0 0.0
  %691 = vmatpush1.msra.mxu0 0.0
  %692 = vmatprep.subr.mxu0 0.0
  %693 = vmatpush1.msra.mxu0 0.0
  %694 = vmatprep.subr.mxu0 0.0
  %695 = vmatpush1.msra.mxu0 0.0
  %696 = vmatprep.subr.mxu0 0.0
  %697 = vmatpush1.msra.mxu0 0.0
  %698 = vmatprep.subr.mxu0 0.0
  %699 = vmatpush1.msra.mxu0 0.0
  %700 = vmatprep.subr.mxu0 0.0
  %701 = vmatpush1.msra.mxu0 0.0
  %702 = vmatprep.subr.mxu0 0.0
  %703 = vmatpush1.msra.mxu0 0.0
  %704 = vmatprep.subr.mxu0 0.0
  %705 = vmatpush1.msra.mxu0 0.0
  %706 = vmatprep.subr.mxu0 0.0
  %707 = vmatpush1.msra.mxu0 0.0
  %708 = vmatprep.subr.mxu0 0.0
  %709 = vmatpush1.msra.mxu0 0.0
  %710 = vmatprep.subr.mxu0 0.0
  %711 = vmatpush1.msra.mxu0 0.0
  %712 = vmatprep.mubr.f32.mxu0 0.0
  %713 = vmatmul.mubr.f32.gmra.mrb[0].mxu0 %v500
  %v714 = vpop.f32.mrb[0].mxu0
  %v715 = vadd.f32 0.0, %v714
  %v716 = vpop.f32.mrb[0].mxu0
  %717 = vdwg.mxu0
  %v718 = vadd.f32 %v165, %v715
  %v719 = vtanh.pop %v718
  %v721 = vsel %vm193, %v719, 0
  %723 = vmatprep.subr.mxu0 0.0
  %724 = vmatpush1.msra.mxu0 %v25
  %725 = vmatprep.subr.mxu0 0.0
  %726 = vmatpush1.msra.mxu0 %v26
  %727 = vmatprep.subr.mxu0 0.0
  %728 = vmatpush1.msra.mxu0 %v27
  %729 = vmatprep.subr.mxu0 0.0
  %730 = vmatpush1.msra.mxu0 %v28
  %731 = vmatprep.subr.mxu0 0.0
  %732 = vmatpush1.msra.mxu0 %v29
  %733 = vmatprep.subr.mxu0 0.0
  %734 = vmatpush1.msra.mxu0 %v30
  %735 = vmatprep.subr.mxu0 0.0
  %736 = vmatpush1.msra.mxu0 %v276
  %737 = vmatprep.subr.mxu0 0.0
  %738 = vmatpush1.msra.mxu0 0.0
  %739 = vmatprep.subr.mxu0 0.0
  %740 = vmatpush1.msra.mxu0 0.0
  %741 = vmatprep.subr.mxu0 0.0
  %742 = vmatpush1.msra.mxu0 0.0
  %743 = vmatprep.subr.mxu0 0.0
  %744 = vmatpush1.msra.mxu0 0.0
  %745 = vmatprep.subr.mxu0 0.0
  %746 = vmatpush1.msra.mxu0 0.0
  %747 = vmatprep.subr.mxu0 0.0
  %748 = vmatpush1.msra.mxu0 0.0
  %749 = vmatprep.subr.mxu0 0.0
  %750 = vmatpush1.msra.mxu0 0.0
  %751 = vmatprep.subr.mxu0 0.0
  %752 = vmatpush1.msra.mxu0 0.0
  %753 = vmatprep.subr.mxu0 0.0
  %754 = vmatpush1.msra.mxu0 0.0
  %755 = vmatprep.subr.mxu0 0.0
  %756 = vmatpush1.msra.mxu0 0.0
  %757 = vmatprep.subr.mxu0 0.0
  %758 = vmatpush1.msra.mxu0 0.0
  %759 = vmatprep.subr.mxu0 0.0
  %760 = vmatpush1.msra.mxu0 0.0
  %761 = vmatprep.subr.mxu0 0.0
  %762 = vmatpush1.msra.mxu0 0.0
  %763 = vmatprep.subr.mxu0 0.0
  %764 = vmatpush1.msra.mxu0 0.0
  %765 = vmatprep.subr.mxu0 0.0
  %766 = vmatpush1.msra.mxu0 0.0
  %767 = vmatprep.subr.mxu0 0.0
  %768 = vmatpush1.msra.mxu0 0.0
  %769 = vmatprep.subr.mxu0 0.0
  %770 = vmatpush1.msra.mxu0 0.0
  %771 = vmatprep.subr.mxu0 0.0
  %772 = vmatpush1.msra.mxu0 0.0
  %773 = vmatprep.subr.mxu0 0.0
  %774 = vmatpush1.msra.mxu0 0.0
  %775 = vmatprep.subr.mxu0 0.0
  %776 = vmatpush1.msra.mxu0 0.0
  %777 = vmatprep.subr.mxu0 0.0
  %778 = vmatpush1.msra.mxu0 0.0
  %779 = vmatprep.subr.mxu0 0.0
  %780 = vmatpush1.msra.mxu0 0.0
  %781 = vmatprep.subr.mxu0 0.0
  %782 = vmatpush1.msra.mxu0 0.0
  %783 = vmatprep.subr.mxu0 0.0
  %784 = vmatpush1.msra.mxu0 0.0
  %785 = vmatprep.subr.mxu0 0.0
  %786 = vmatpush1.msra.mxu0 0.0
  %787 = vmatprep.mubr.f32.mxu0 0.0
  %788 = vmatmul.mubr.f32.gmra.mrb[0].mxu0 %v721
  %v789 = vpop.f32.mrb[0].mxu0
  %v790 = vadd.f32 %v44, %v789
  %v791 = vpop.f32.mrb[0].mxu0
  %792 = vdwg.mxu0
  %v794 = vsel %vm193, %v646, 0
  %796 = vmatprep.subr.mxu0 0.0
  %797 = vmatpush1.msra.mxu0 %v32
  %798 = vmatprep.subr.mxu0 0.0
  %799 = vmatpush1.msra.mxu0 %v33
  %800 = vmatprep.subr.mxu0 0.0
  %801 = vmatpush1.msra.mxu0 %v34
  %802 = vmatprep.subr.mxu0 0.0
  %803 = vmatpush1.msra.mxu0 %v35
  %804 = vmatprep.subr.mxu0 0.0
  %805 = vmatpush1.msra.mxu0 %v36
  %806 = vmatprep.subr.mxu0 0.0
  %807 = vmatpush1.msra.mxu0 %v37
  %808 = vmatprep.subr.mxu0 0.0
  %809 = vmatpush1.msra.mxu0 %v352
  %810 = vmatprep.subr.mxu0 0.0
  %811 = vmatpush1.msra.mxu0 0.0
  %812 = vmatprep.subr.mxu0 0.0
  %813 = vmatpush1.msra.mxu0 0.0
  %814 = vmatprep.subr.mxu0 0.0
  %815 = vmatpush1.msra.mxu0 0.0
  %816 = vmatprep.subr.mxu0 0.0
  %817 = vmatpush1.msra.mxu0 0.0
  %818 = vmatprep.subr.mxu0 0.0
  %819 = vmatpush1.msra.mxu0 0.0
  %820 = vmatprep.subr.mxu0 0.0
  %821 = vmatpush1.msra.mxu0 0.0
  %822 = vmatprep.subr.mxu0 0.0
  %823 = vmatpush1.msra.mxu0 0.0
  %824 = vmatprep.subr.mxu0 0.0
  %825 = vmatpush1.msra.mxu0 0.0
  %826 = vmatprep.subr.mxu0 0.0
  %827 = vmatpush1.msra.mxu0 0.0
  %828 = vmatprep.subr.mxu0 0.0
  %829 = vmatpush1.msra.mxu0 0.0
  %830 = vmatprep.subr.mxu0 0.0
  %831 = vmatpush1.msra.mxu0 0.0
  %832 = vmatprep.subr.mxu0 0.0
  %833 = vmatpush1.msra.mxu0 0.0
  %834 = vmatprep.subr.mxu0 0.0
  %835 = vmatpush1.msra.mxu0 0.0
  %836 = vmatprep.subr.mxu0 0.0
  %837 = vmatpush1.msra.mxu0 0.0
  %838 = vmatprep.subr.mxu0 0.0
  %839 = vmatpush1.msra.mxu0 0.0
  %840 = vmatprep.subr.mxu0 0.0
  %841 = vmatpush1.msra.mxu0 0.0
  %842 = vmatprep.subr.mxu0 0.0
  %843 = vmatpush1.msra.mxu0 0.0
  %844 = vmatprep.subr.mxu0 0.0
  %845 = vmatpush1.msra.mxu0 0.0
  %846 = vmatprep.subr.mxu0 0.0
  %847 = vmatpush1.msra.mxu0 0.0
  %848 = vmatprep.subr.mxu0 0.0
  %849 = vmatpush1.msra.mxu0 0.0
  %850 = vmatprep.subr.mxu0 0.0
  %851 = vmatpush1.msra.mxu0 0.0
  %852 = vmatprep.subr.mxu0 0.0
  %853 = vmatpush1.msra.mxu0 0.0
  %854 = vmatprep.subr.mxu0 0.0
  %855 = vmatpush1.msra.mxu0 0.0
  %856 = vmatprep.subr.mxu0 0.0
  %857 = vmatpush1.msra.mxu0 0.0
  %858 = vmatprep.subr.mxu0 0.0
  %859 = vmatpush1.msra.mxu0 0.0
  %860 = vmatprep.mubr.f32.mxu0 0.0
  %861 = vmatmul.mubr.f32.gmra.mrb[0].mxu0 %v794
  %v862 = vpop.f32.mrb[0].mxu0
  %v863 = vadd.f32 0.0, %v862
  %v864 = vpop.f32.mrb[0].mxu0
  %865 = vdwg.mxu0
  %v866 = vadd.f32 %v790, %v863
  %v867 = vtanh.pop %v866
  %868 = vst.msk [vmem:[#allocation2 + $0x10] sm:$0xff] %vm193, %v867
  %869 = vmatprep.subr.mxu0 0.0
  %870 = vmatpush1.msra.mxu0 %v18
  %871 = vmatprep.subr.mxu0 0.0
  %872 = vmatpush1.msra.mxu0 %v19
  %873 = vmatprep.subr.mxu0 0.0
  %874 = vmatpush1.msra.mxu0 %v20
  %875 = vmatprep.subr.mxu0 0.0
  %876 = vmatpush1.msra.mxu0 %v21
  %877 = vmatprep.subr.mxu0 0.0
  %878 = vmatpush1.msra.mxu0 %v22
  %879 = vmatprep.subr.mxu0 0.0
  %880 = vmatpush1.msra.mxu0 %v23
  %881 = vmatprep.subr.mxu0 0.0
  %882 = vmatpush1.msra.mxu0 %v198
  %883 = vmatprep.subr.mxu0 0.0
  %884 = vmatpush1.msra.mxu0 0.0
  %885 = vmatprep.subr.mxu0 0.0
  %886 = vmatpush1.msra.mxu0 0.0
  %887 = vmatprep.subr.mxu0 0.0
  %888 = vmatpush1.msra.mxu0 0.0
  %889 = vmatprep.subr.mxu0 0.0
  %890 = vmatpush1.msra.mxu0 0.0
  %891 = vmatprep.subr.mxu0 0.0
  %892 = vmatpush1.msra.mxu0 0.0
  %893 = vmatprep.subr.mxu0 0.0
  %894 = vmatpush1.msra.mxu0 0.0
  %895 = vmatprep.subr.mxu0 0.0
  %896 = vmatpush1.msra.mxu0 0.0
  %897 = vmatprep.subr.mxu0 0.0
  %898 = vmatpush1.msra.mxu0 0.0
  %899 = vmatprep.subr.mxu0 0.0
  %900 = vmatpush1.msra.mxu0 0.0
  %901 = vmatprep.subr.mxu0 0.0
  %902 = vmatpush1.msra.mxu0 0.0
  %903 = vmatprep.subr.mxu0 0.0
  %904 = vmatpush1.msra.mxu0 0.0
  %905 = vmatprep.subr.mxu0 0.0
  %906 = vmatpush1.msra.mxu0 0.0
  %907 = vmatprep.subr.mxu0 0.0
  %908 = vmatpush1.msra.mxu0 0.0
  %909 = vmatprep.subr.mxu0 0.0
  %910 = vmatpush1.msra.mxu0 0.0
  %911 = vmatprep.subr.mxu0 0.0
  %912 = vmatpush1.msra.mxu0 0.0
  %913 = vmatprep.subr.mxu0 0.0
  %914 = vmatpush1.msra.mxu0 0.0
  %915 = vmatprep.subr.mxu0 0.0
  %916 = vmatpush1.msra.mxu0 0.0
  %917 = vmatprep.subr.mxu0 0.0
  %918 = vmatpush1.msra.mxu0 0.0
  %919 = vmatprep.subr.mxu0 0.0
  %920 = vmatpush1.msra.mxu0 0.0
  %921 = vmatprep.subr.mxu0 0.0
  %922 = vmatpush1.msra.mxu0 0.0
  %923 = vmatprep.subr.mxu0 0.0
  %924 = vmatpush1.msra.mxu0 0.0
  %925 = vmatprep.subr.mxu0 0.0
  %926 = vmatpush1.msra.mxu0 0.0
  %927 = vmatprep.subr.mxu0 0.0
  %928 = vmatpush1.msra.mxu0 0.0
  %929 = vmatprep.subr.mxu0 0.0
  %930 = vmatpush1.msra.mxu0 0.0
  %931 = vmatprep.subr.mxu0 0.0
  %932 = vmatpush1.msra.mxu0 0.0
  %933 = vmatprep.mubr.f32.mxu0 0.0
  %934 = vmatmul.mubr.f32.gmra.mrb[0].mxu0 %v721
  %v935 = vpop.f32.mrb[0].mxu0
  %v936 = vadd.f32 0.0, %v935
  %v937 = vpop.f32.mrb[0].mxu0
  %938 = vdwg.mxu0
  %v939 = vadd.f32 %v170, %v936
  %v940 = vtanh.pop %v939
  %v942 = vsel %vm193, %v940, 0
  %944 = vmatprep.subr.mxu0 0.0
  %945 = vmatpush1.msra.mxu0 %v25
  %946 = vmatprep.subr.mxu0 0.0
  %947 = vmatpush1.msra.mxu0 %v26
  %948 = vmatprep.subr.mxu0 0.0
  %949 = vmatpush1.msra.mxu0 %v27
  %950 = vmatprep.subr.mxu0 0.0
  %951 = vmatpush1.msra.mxu0 %v28
  %952 = vmatprep.subr.mxu0 0.0
  %953 = vmatpush1.msra.mxu0 %v29
  %954 = vmatprep.subr.mxu0 0.0
  %955 = vmatpush1.msra.mxu0 %v30
  %956 = vmatprep.subr.mxu0 0.0
  %957 = vmatpush1.msra.mxu0 %v276
  %958 = vmatprep.subr.mxu0 0.0
  %959 = vmatpush1.msra.mxu0 0.0
  %960 = vmatprep.subr.mxu0 0.0
  %961 = vmatpush1.msra.mxu0 0.0
  %962 = vmatprep.subr.mxu0 0.0
  %963 = vmatpush1.msra.mxu0 0.0
  %964 = vmatprep.subr.mxu0 0.0
  %965 = vmatpush1.msra.mxu0 0.0
  %966 = vmatprep.subr.mxu0 0.0
  %967 = vmatpush1.msra.mxu0 0.0
  %968 = vmatprep.subr.mxu0 0.0
  %969 = vmatpush1.msra.mxu0 0.0
  %970 = vmatprep.subr.mxu0 0.0
  %971 = vmatpush1.msra.mxu0 0.0
  %972 = vmatprep.subr.mxu0 0.0
  %973 = vmatpush1.msra.mxu0 0.0
  %974 = vmatprep.subr.mxu0 0.0
  %975 = vmatpush1.msra.mxu0 0.0
  %976 = vmatprep.subr.mxu0 0.0
  %977 = vmatpush1.msra.mxu0 0.0
  %978 = vmatprep.subr.mxu0 0.0
  %979 = vmatpush1.msra.mxu0 0.0
  %980 = vmatprep.subr.mxu0 0.0
  %981 = vmatpush1.msra.mxu0 0.0
  %982 = vmatprep.subr.mxu0 0.0
  %983 = vmatpush1.msra.mxu0 0.0
  %984 = vmatprep.subr.mxu0 0.0
  %985 = vmatpush1.msra.mxu0 0.0
  %986 = vmatprep.subr.mxu0 0.0
  %987 = vmatpush1.msra.mxu0 0.0
  %988 = vmatprep.subr.mxu0 0.0
  %989 = vmatpush1.msra.mxu0 0.0
  %990 = vmatprep.subr.mxu0 0.0
  %991 = vmatpush1.msra.mxu0 0.0
  %992 = vmatprep.subr.mxu0 0.0
  %993 = vmatpush1.msra.mxu0 0.0
  %994 = vmatprep.subr.mxu0 0.0
  %995 = vmatpush1.msra.mxu0 0.0
  %996 = vmatprep.subr.mxu0 0.0
  %997 = vmatpush1.msra.mxu0 0.0
  %998 = vmatprep.subr.mxu0 0.0
  %999 = vmatpush1.msra.mxu0 0.0
  %1000 = vmatprep.subr.mxu0 0.0
  %1001 = vmatpush1.msra.mxu0 0.0
  %1002 = vmatprep.subr.mxu0 0.0
  %1003 = vmatpush1.msra.mxu0 0.0
  %1004 = vmatprep.subr.mxu0 0.0
  %1005 = vmatpush1.msra.mxu0 0.0
  %1006 = vmatprep.subr.mxu0 0.0
  %1007 = vmatpush1.msra.mxu0 0.0
  %1008 = vmatprep.mubr.f32.mxu0 0.0
  %1009 = vmatmul.mubr.f32.gmra.mrb[0].mxu0 %v942
  %v1010 = vpop.f32.mrb[0].mxu0
  %v1011 = vadd.f32 %v44, %v1010
  %v1012 = vpop.f32.mrb[0].mxu0
  %1013 = vdwg.mxu0
  %v1015 = vsel %vm193, %v867, 0
  %1017 = vmatprep.subr.mxu0 0.0
  %1018 = vmatpush1.msra.mxu0 %v32
  %1019 = vmatprep.subr.mxu0 0.0
  %1020 = vmatpush1.msra.mxu0 %v33
  %1021 = vmatprep.subr.mxu0 0.0
  %1022 = vmatpush1.msra.mxu0 %v34
  %1023 = vmatprep.subr.mxu0 0.0
  %1024 = vmatpush1.msra.mxu0 %v35
  %1025 = vmatprep.subr.mxu0 0.0
  %1026 = vmatpush1.msra.mxu0 %v36
  %1027 = vmatprep.subr.mxu0 0.0
  %1028 = vmatpush1.msra.mxu0 %v37
  %1029 = vmatprep.subr.mxu0 0.0
  %1030 = vmatpush1.msra.mxu0 %v352
  %1031 = vmatprep.subr.mxu0 0.0
  %1032 = vmatpush1.msra.mxu0 0.0
  %1033 = vmatprep.subr.mxu0 0.0
  %1034 = vmatpush1.msra.mxu0 0.0
  %1035 = vmatprep.subr.mxu0 0.0
  %1036 = vmatpush1.msra.mxu0 0.0
  %1037 = vmatprep.subr.mxu0 0.0
  %1038 = vmatpush1.msra.mxu0 0.0
  %1039 = vmatprep.subr.mxu0 0.0
  %1040 = vmatpush1.msra.mxu0 0.0
  %1041 = vmatprep.subr.mxu0 0.0
  %1042 = vmatpush1.msra.mxu0 0.0
  %1043 = vmatprep.subr.mxu0 0.0
  %1044 = vmatpush1.msra.mxu0 0.0
  %1045 = vmatprep.subr.mxu0 0.0
  %1046 = vmatpush1.msra.mxu0 0.0
  %1047 = vmatprep.subr.mxu0 0.0
  %1048 = vmatpush1.msra.mxu0 0.0
  %1049 = vmatprep.subr.mxu0 0.0
  %1050 = vmatpush1.msra.mxu0 0.0
  %1051 = vmatprep.subr.mxu0 0.0
  %1052 = vmatpush1.msra.mxu0 0.0
  %1053 = vmatprep.subr.mxu0 0.0
  %1054 = vmatpush1.msra.mxu0 0.0
  %1055 = vmatprep.subr.mxu0 0.0
  %1056 = vmatpush1.msra.mxu0 0.0
  %1057 = vmatprep.subr.mxu0 0.0
  %1058 = vmatpush1.msra.mxu0 0.0
  %1059 = vmatprep.subr.mxu0 0.0
  %1060 = vmatpush1.msra.mxu0 0.0
  %1061 = vmatprep.subr.mxu0 0.0
  %1062 = vmatpush1.msra.mxu0 0.0
  %1063 = vmatprep.subr.mxu0 0.0
  %1064 = vmatpush1.msra.mxu0 0.0
  %1065 = vmatprep.subr.mxu0 0.0
  %1066 = vmatpush1.msra.mxu0 0.0
  %1067 = vmatprep.subr.mxu0 0.0
  %1068 = vmatpush1.msra.mxu0 0.0
  %1069 = vmatprep.subr.mxu0 0.0
  %1070 = vmatpush1.msra.mxu0 0.0
  %1071 = vmatprep.subr.mxu0 0.0
  %1072 = vmatpush1.msra.mxu0 0.0
  %1073 = vmatprep.subr.mxu0 0.0
  %1074 = vmatpush1.msra.mxu0 0.0
  %1075 = vmatprep.subr.mxu0 0.0
  %1076 = vmatpush1.msra.mxu0 0.0
  %1077 = vmatprep.subr.mxu0 0.0
  %1078 = vmatpush1.msra.mxu0 0.0
  %1079 = vmatprep.subr.mxu0 0.0
  %1080 = vmatpush1.msra.mxu0 0.0
  %1081 = vmatprep.mubr.f32.mxu0 0.0
  %1082 = vmatmul.mubr.f32.gmra.mrb[0].mxu0 %v1015
  %v1083 = vpop.f32.mrb[0].mxu0
  %v1084 = vadd.f32 0.0, %v1083
  %v1085 = vpop.f32.mrb[0].mxu0
  %1086 = vdwg.mxu0
  %v1087 = vadd.f32 %v1011, %v1084
  %v1088 = vtanh.pop %v1087
  %1089 = vst.msk [vmem:[#allocation2 + $0x18] sm:$0xff] %vm193, %v1088
  %1090 = vmatprep.subr.mxu0 0.0
  %1091 = vmatpush1.msra.mxu0 %v18
  %1092 = vmatprep.subr.mxu0 0.0
  %1093 = vmatpush1.msra.mxu0 %v19
  %1094 = vmatprep.subr.mxu0 0.0
  %1095 = vmatpush1.msra.mxu0 %v20
  %1096 = vmatprep.subr.mxu0 0.0
  %1097 = vmatpush1.msra.mxu0 %v21
  %1098 = vmatprep.subr.mxu0 0.0
  %1099 = vmatpush1.msra.mxu0 %v22
  %1100 = vmatprep.subr.mxu0 0.0
  %1101 = vmatpush1.msra.mxu0 %v23
  %1102 = vmatprep.subr.mxu0 0.0
  %1103 = vmatpush1.msra.mxu0 %v198
  %1104 = vmatprep.subr.mxu0 0.0
  %1105 = vmatpush1.msra.mxu0 0.0
  %1106 = vmatprep.subr.mxu0 0.0
  %1107 = vmatpush1.msra.mxu0 0.0
  %1108 = vmatprep.subr.mxu0 0.0
  %1109 = vmatpush1.msra.mxu0 0.0
  %1110 = vmatprep.subr.mxu0 0.0
  %1111 = vmatpush1.msra.mxu0 0.0
  %1112 = vmatprep.subr.mxu0 0.0
  %1113 = vmatpush1.msra.mxu0 0.0
  %1114 = vmatprep.subr.mxu0 0.0
  %1115 = vmatpush1.msra.mxu0 0.0
  %1116 = vmatprep.subr.mxu0 0.0
  %1117 = vmatpush1.msra.mxu0 0.0
  %1118 = vmatprep.subr.mxu0 0.0
  %1119 = vmatpush1.msra.mxu0 0.0
  %1120 = vmatprep.subr.mxu0 0.0
  %1121 = vmatpush1.msra.mxu0 0.0
  %1122 = vmatprep.subr.mxu0 0.0
  %1123 = vmatpush1.msra.mxu0 0.0
  %1124 = vmatprep.subr.mxu0 0.0
  %1125 = vmatpush1.msra.mxu0 0.0
  %1126 = vmatprep.subr.mxu0 0.0
  %1127 = vmatpush1.msra.mxu0 0.0
  %1128 = vmatprep.subr.mxu0 0.0
  %1129 = vmatpush1.msra.mxu0 0.0
  %1130 = vmatprep.subr.mxu0 0.0
  %1131 = vmatpush1.msra.mxu0 0.0
  %1132 = vmatprep.subr.mxu0 0.0
  %1133 = vmatpush1.msra.mxu0 0.0
  %1134 = vmatprep.subr.mxu0 0.0
  %1135 = vmatpush1.msra.mxu0 0.0
  %1136 = vmatprep.subr.mxu0 0.0
  %1137 = vmatpush1.msra.mxu0 0.0
  %1138 = vmatprep.subr.mxu0 0.0
  %1139 = vmatpush1.msra.mxu0 0.0
  %1140 = vmatprep.subr.mxu0 0.0
  %1141 = vmatpush1.msra.mxu0 0.0
  %1142 = vmatprep.subr.mxu0 0.0
  %1143 = vmatpush1.msra.mxu0 0.0
  %1144 = vmatprep.subr.mxu0 0.0
  %1145 = vmatpush1.msra.mxu0 0.0
  %1146 = vmatprep.subr.mxu0 0.0
  %1147 = vmatpush1.msra.mxu0 0.0
  %1148 = vmatprep.subr.mxu0 0.0
  %1149 = vmatpush1.msra.mxu0 0.0
  %1150 = vmatprep.subr.mxu0 0.0
  %1151 = vmatpush1.msra.mxu0 0.0
  %1152 = vmatprep.subr.mxu0 0.0
  %1153 = vmatpush1.msra.mxu0 0.0
  %1154 = vmatprep.mubr.f32.mxu0 0.0
  %1155 = vmatmul.mubr.f32.gmra.mrb[0].mxu0 %v942
  %v1156 = vpop.f32.mrb[0].mxu0
  %v1157 = vadd.f32 0.0, %v1156
  %v1158 = vpop.f32.mrb[0].mxu0
  %1159 = vdwg.mxu0
  %v1160 = vadd.f32 %v175, %v1157
  %v1161 = vtanh.pop %v1160
  %v1163 = vsel %vm193, %v1161, 0
  %1165 = vmatprep.subr.mxu0 0.0
  %1166 = vmatpush1.msra.mxu0 %v25
  %1167 = vmatprep.subr.mxu0 0.0
  %1168 = vmatpush1.msra.mxu0 %v26
  %1169 = vmatprep.subr.mxu0 0.0
  %1170 = vmatpush1.msra.mxu0 %v27
  %1171 = vmatprep.subr.mxu0 0.0
  %1172 = vmatpush1.msra.mxu0 %v28
  %1173 = vmatprep.subr.mxu0 0.0
  %1174 = vmatpush1.msra.mxu0 %v29
  %1175 = vmatprep.subr.mxu0 0.0
  %1176 = vmatpush1.msra.mxu0 %v30
  %1177 = vmatprep.subr.mxu0 0.0
  %1178 = vmatpush1.msra.mxu0 %v276
  %1179 = vmatprep.subr.mxu0 0.0
  %1180 = vmatpush1.msra.mxu0 0.0
  %1181 = vmatprep.subr.mxu0 0.0
  %1182 = vmatpush1.msra.mxu0 0.0
  %1183 = vmatprep.subr.mxu0 0.0
  %1184 = vmatpush1.msra.mxu0 0.0
  %1185 = vmatprep.subr.mxu0 0.0
  %1186 = vmatpush1.msra.mxu0 0.0
  %1187 = vmatprep.subr.mxu0 0.0
  %1188 = vmatpush1.msra.mxu0 0.0
  %1189 = vmatprep.subr.mxu0 0.0
  %1190 = vmatpush1.msra.mxu0 0.0
  %1191 = vmatprep.subr.mxu0 0.0
  %1192 = vmatpush1.msra.mxu0 0.0
  %1193 = vmatprep.subr.mxu0 0.0
  %1194 = vmatpush1.msra.mxu0 0.0
  %1195 = vmatprep.subr.mxu0 0.0
  %1196 = vmatpush1.msra.mxu0 0.0
  %1197 = vmatprep.subr.mxu0 0.0
  %1198 = vmatpush1.msra.mxu0 0.0
  %1199 = vmatprep.subr.mxu0 0.0
  %1200 = vmatpush1.msra.mxu0 0.0
  %1201 = vmatprep.subr.mxu0 0.0
  %1202 = vmatpush1.msra.mxu0 0.0
  %1203 = vmatprep.subr.mxu0 0.0
  %1204 = vmatpush1.msra.mxu0 0.0
  %1205 = vmatprep.subr.mxu0 0.0
  %1206 = vmatpush1.msra.mxu0 0.0
  %1207 = vmatprep.subr.mxu0 0.0
  %1208 = vmatpush1.msra.mxu0 0.0
  %1209 = vmatprep.subr.mxu0 0.0
  %1210 = vmatpush1.msra.mxu0 0.0
  %1211 = vmatprep.subr.mxu0 0.0
  %1212 = vmatpush1.msra.mxu0 0.0
  %1213 = vmatprep.subr.mxu0 0.0
  %1214 = vmatpush1.msra.mxu0 0.0
  %1215 = vmatprep.subr.mxu0 0.0
  %1216 = vmatpush1.msra.mxu0 0.0
  %1217 = vmatprep.subr.mxu0 0.0
  %1218 = vmatpush1.msra.mxu0 0.0
  %1219 = vmatprep.subr.mxu0 0.0
  %1220 = vmatpush1.msra.mxu0 0.0
  %1221 = vmatprep.subr.mxu0 0.0
  %1222 = vmatpush1.msra.mxu0 0.0
  %1223 = vmatprep.subr.mxu0 0.0
  %1224 = vmatpush1.msra.mxu0 0.0
  %1225 = vmatprep.subr.mxu0 0.0
  %1226 = vmatpush1.msra.mxu0 0.0
  %1227 = vmatprep.subr.mxu0 0.0
  %1228 = vmatpush1.msra.mxu0 0.0
  %1229 = vmatprep.mubr.f32.mxu0 0.0
  %1230 = vmatmul.mubr.f32.gmra.mrb[0].mxu0 %v1163
  %v1231 = vpop.f32.mrb[0].mxu0
  %v1232 = vadd.f32 %v44, %v1231
  %v1233 = vpop.f32.mrb[0].mxu0
  %1234 = vdwg.mxu0
  %v1236 = vsel %vm193, %v1088, 0
  %1238 = vmatprep.subr.mxu0 0.0
  %1239 = vmatpush1.msra.mxu0 %v32
  %1240 = vmatprep.subr.mxu0 0.0
  %1241 = vmatpush1.msra.mxu0 %v33
  %1242 = vmatprep.subr.mxu0 0.0
  %1243 = vmatpush1.msra.mxu0 %v34
  %1244 = vmatprep.subr.mxu0 0.0
  %1245 = vmatpush1.msra.mxu0 %v35
  %1246 = vmatprep.subr.mxu0 0.0
  %1247 = vmatpush1.msra.mxu0 %v36
  %1248 = vmatprep.subr.mxu0 0.0
  %1249 = vmatpush1.msra.mxu0 %v37
  %1250 = vmatprep.subr.mxu0 0.0
  %1251 = vmatpush1.msra.mxu0 %v352
  %1252 = vmatprep.subr.mxu0 0.0
  %1253 = vmatpush1.msra.mxu0 0.0
  %1254 = vmatprep.subr.mxu0 0.0
  %1255 = vmatpush1.msra.mxu0 0.0
  %1256 = vmatprep.subr.mxu0 0.0
  %1257 = vmatpush1.msra.mxu0 0.0
  %1258 = vmatprep.subr.mxu0 0.0
  %1259 = vmatpush1.msra.mxu0 0.0
  %1260 = vmatprep.subr.mxu0 0.0
  %1261 = vmatpush1.msra.mxu0 0.0
  %1262 = vmatprep.subr.mxu0 0.0
  %1263 = vmatpush1.msra.mxu0 0.0
  %1264 = vmatprep.subr.mxu0 0.0
  %1265 = vmatpush1.msra.mxu0 0.0
  %1266 = vmatprep.subr.mxu0 0.0
  %1267 = vmatpush1.msra.mxu0 0.0
  %1268 = vmatprep.subr.mxu0 0.0
  %1269 = vmatpush1.msra.mxu0 0.0
  %1270 = vmatprep.subr.mxu0 0.0
  %1271 = vmatpush1.msra.mxu0 0.0
  %1272 = vmatprep.subr.mxu0 0.0
  %1273 = vmatpush1.msra.mxu0 0.0
  %1274 = vmatprep.subr.mxu0 0.0
  %1275 = vmatpush1.msra.mxu0 0.0
  %1276 = vmatprep.subr.mxu0 0.0
  %1277 = vmatpush1.msra.mxu0 0.0
  %1278 = vmatprep.subr.mxu0 0.0
  %1279 = vmatpush1.msra.mxu0 0.0
  %1280 = vmatprep.subr.mxu0 0.0
  %1281 = vmatpush1.msra.mxu0 0.0
  %1282 = vmatprep.subr.mxu0 0.0
  %1283 = vmatpush1.msra.mxu0 0.0
  %1284 = vmatprep.subr.mxu0 0.0
  %1285 = vmatpush1.msra.mxu0 0.0
  %1286 = vmatprep.subr.mxu0 0.0
  %1287 = vmatpush1.msra.mxu0 0.0
  %1288 = vmatprep.subr.mxu0 0.0
  %1289 = vmatpush1.msra.mxu0 0.0
  %1290 = vmatprep.subr.mxu0 0.0
  %1291 = vmatpush1.msra.mxu0 0.0
  %1292 = vmatprep.subr.mxu0 0.0
  %1293 = vmatpush1.msra.mxu0 0.0
  %1294 = vmatprep.subr.mxu0 0.0
  %1295 = vmatpush1.msra.mxu0 0.0
  %1296 = vmatprep.subr.mxu0 0.0
  %1297 = vmatpush1.msra.mxu0 0.0
  %1298 = vmatprep.subr.mxu0 0.0
  %1299 = vmatpush1.msra.mxu0 0.0
  %1300 = vmatprep.subr.mxu0 0.0
  %1301 = vmatpush1.msra.mxu0 0.0
  %1302 = vmatprep.mubr.f32.mxu0 0.0
  %1303 = vmatmul.mubr.f32.gmra.mrb[0].mxu0 %v1236
  %v1304 = vpop.f32.mrb[0].mxu0
  %v1305 = vadd.f32 0.0, %v1304
  %v1306 = vpop.f32.mrb[0].mxu0
  %1307 = vdwg.mxu0
  %v1308 = vadd.f32 %v1232, %v1305
  %v1309 = vtanh.pop %v1308
  %1310 = vst.msk [vmem:[#allocation2 + $0x20] sm:$0xff] %vm193, %v1309
  %1311 = vmatprep.subr.mxu0 0.0
  %1312 = vmatpush1.msra.mxu0 %v18
  %1313 = vmatprep.subr.mxu0 0.0
  %1314 = vmatpush1.msra.mxu0 %v19
  %1315 = vmatprep.subr.mxu0 0.0
  %1316 = vmatpush1.msra.mxu0 %v20
  %1317 = vmatprep.subr.mxu0 0.0
  %1318 = vmatpush1.msra.mxu0 %v21
  %1319 = vmatprep.subr.mxu0 0.0
  %1320 = vmatpush1.msra.mxu0 %v22
  %1321 = vmatprep.subr.mxu0 0.0
  %1322 = vmatpush1.msra.mxu0 %v23
  %1323 = vmatprep.subr.mxu0 0.0
  %1324 = vmatpush1.msra.mxu0 %v198
  %1325 = vmatprep.subr.mxu0 0.0
  %1326 = vmatpush1.msra.mxu0 0.0
  %1327 = vmatprep.subr.mxu0 0.0
  %1328 = vmatpush1.msra.mxu0 0.0
  %1329 = vmatprep.subr.mxu0 0.0
  %1330 = vmatpush1.msra.mxu0 0.0
  %1331 = vmatprep.subr.mxu0 0.0
  %1332 = vmatpush1.msra.mxu0 0.0
  %1333 = vmatprep.subr.mxu0 0.0
  %1334 = vmatpush1.msra.mxu0 0.0
  %1335 = vmatprep.subr.mxu0 0.0
  %1336 = vmatpush1.msra.mxu0 0.0
  %1337 = vmatprep.subr.mxu0 0.0
  %1338 = vmatpush1.msra.mxu0 0.0
  %1339 = vmatprep.subr.mxu0 0.0
  %1340 = vmatpush1.msra.mxu0 0.0
  %1341 = vmatprep.subr.mxu0 0.0
  %1342 = vmatpush1.msra.mxu0 0.0
  %1343 = vmatprep.subr.mxu0 0.0
  %1344 = vmatpush1.msra.mxu0 0.0
  %1345 = vmatprep.subr.mxu0 0.0
  %1346 = vmatpush1.msra.mxu0 0.0
  %1347 = vmatprep.subr.mxu0 0.0
  %1348 = vmatpush1.msra.mxu0 0.0
  %1349 = vmatprep.subr.mxu0 0.0
  %1350 = vmatpush1.msra.mxu0 0.0
  %1351 = vmatprep.subr.mxu0 0.0
  %1352 = vmatpush1.msra.mxu0 0.0
  %1353 = vmatprep.subr.mxu0 0.0
  %1354 = vmatpush1.msra.mxu0 0.0
  %1355 = vmatprep.subr.mxu0 0.0
  %1356 = vmatpush1.msra.mxu0 0.0
  %1357 = vmatprep.subr.mxu0 0.0
  %1358 = vmatpush1.msra.mxu0 0.0
  %1359 = vmatprep.subr.mxu0 0.0
  %1360 = vmatpush1.msra.mxu0 0.0
  %1361 = vmatprep.subr.mxu0 0.0
  %1362 = vmatpush1.msra.mxu0 0.0
  %1363 = vmatprep.subr.mxu0 0.0
  %1364 = vmatpush1.msra.mxu0 0.0
  %1365 = vmatprep.subr.mxu0 0.0
  %1366 = vmatpush1.msra.mxu0 0.0
  %1367 = vmatprep.subr.mxu0 0.0
  %1368 = vmatpush1.msra.mxu0 0.0
  %1369 = vmatprep.subr.mxu0 0.0
  %1370 = vmatpush1.msra.mxu0 0.0
  %1371 = vmatprep.subr.mxu0 0.0
  %1372 = vmatpush1.msra.mxu0 0.0
  %1373 = vmatprep.subr.mxu0 0.0
  %1374 = vmatpush1.msra.mxu0 0.0
  %1375 = vmatprep.mubr.f32.mxu0 0.0
  %1376 = vmatmul.mubr.f32.gmra.mrb[0].mxu0 %v1163
  %v1377 = vpop.f32.mrb[0].mxu0
  %v1378 = vadd.f32 0.0, %v1377
  %v1379 = vpop.f32.mrb[0].mxu0
  %1380 = vdwg.mxu0
  %v1381 = vadd.f32 %v180, %v1378
  %v1382 = vtanh.pop %v1381
  %v1384 = vsel %vm193, %v1382, 0
  %1386 = vmatprep.subr.mxu0 0.0
  %1387 = vmatpush1.msra.mxu0 %v25
  %1388 = vmatprep.subr.mxu0 0.0
  %1389 = vmatpush1.msra.mxu0 %v26
  %1390 = vmatprep.subr.mxu0 0.0
  %1391 = vmatpush1.msra.mxu0 %v27
  %1392 = vmatprep.subr.mxu0 0.0
  %1393 = vmatpush1.msra.mxu0 %v28
  %1394 = vmatprep.subr.mxu0 0.0
  %1395 = vmatpush1.msra.mxu0 %v29
  %1396 = vmatprep.subr.mxu0 0.0
  %1397 = vmatpush1.msra.mxu0 %v30
  %1398 = vmatprep.subr.mxu0 0.0
  %1399 = vmatpush1.msra.mxu0 %v276
  %1400 = vmatprep.subr.mxu0 0.0
  %1401 = vmatpush1.msra.mxu0 0.0
  %1402 = vmatprep.subr.mxu0 0.0
  %1403 = vmatpush1.msra.mxu0 0.0
  %1404 = vmatprep.subr.mxu0 0.0
  %1405 = vmatpush1.msra.mxu0 0.0
  %1406 = vmatprep.subr.mxu0 0.0
  %1407 = vmatpush1.msra.mxu0 0.0
  %1408 = vmatprep.subr.mxu0 0.0
  %1409 = vmatpush1.msra.mxu0 0.0
  %1410 = vmatprep.subr.mxu0 0.0
  %1411 = vmatpush1.msra.mxu0 0.0
  %1412 = vmatprep.subr.mxu0 0.0
  %1413 = vmatpush1.msra.mxu0 0.0
  %1414 = vmatprep.subr.mxu0 0.0
  %1415 = vmatpush1.msra.mxu0 0.0
  %1416 = vmatprep.subr.mxu0 0.0
  %1417 = vmatpush1.msra.mxu0 0.0
  %1418 = vmatprep.subr.mxu0 0.0
  %1419 = vmatpush1.msra.mxu0 0.0
  %1420 = vmatprep.subr.mxu0 0.0
  %1421 = vmatpush1.msra.mxu0 0.0
  %1422 = vmatprep.subr.mxu0 0.0
  %1423 = vmatpush1.msra.mxu0 0.0
  %1424 = vmatprep.subr.mxu0 0.0
  %1425 = vmatpush1.msra.mxu0 0.0
  %1426 = vmatprep.subr.mxu0 0.0
  %1427 = vmatpush1.msra.mxu0 0.0
  %1428 = vmatprep.subr.mxu0 0.0
  %1429 = vmatpush1.msra.mxu0 0.0
  %1430 = vmatprep.subr.mxu0 0.0
  %1431 = vmatpush1.msra.mxu0 0.0
  %1432 = vmatprep.subr.mxu0 0.0
  %1433 = vmatpush1.msra.mxu0 0.0
  %1434 = vmatprep.subr.mxu0 0.0
  %1435 = vmatpush1.msra.mxu0 0.0
  %1436 = vmatprep.subr.mxu0 0.0
  %1437 = vmatpush1.msra.mxu0 0.0
  %1438 = vmatprep.subr.mxu0 0.0
  %1439 = vmatpush1.msra.mxu0 0.0
  %1440 = vmatprep.subr.mxu0 0.0
  %1441 = vmatpush1.msra.mxu0 0.0
  %1442 = vmatprep.subr.mxu0 0.0
  %1443 = vmatpush1.msra.mxu0 0.0
  %1444 = vmatprep.subr.mxu0 0.0
  %1445 = vmatpush1.msra.mxu0 0.0
  %1446 = vmatprep.subr.mxu0 0.0
  %1447 = vmatpush1.msra.mxu0 0.0
  %1448 = vmatprep.subr.mxu0 0.0
  %1449 = vmatpush1.msra.mxu0 0.0
  %1450 = vmatprep.mubr.f32.mxu0 0.0
  %1451 = vmatmul.mubr.f32.gmra.mrb[0].mxu0 %v1384
  %v1452 = vpop.f32.mrb[0].mxu0
  %v1453 = vadd.f32 %v44, %v1452
  %v1454 = vpop.f32.mrb[0].mxu0
  %1455 = vdwg.mxu0
  %v1457 = vsel %vm193, %v1309, 0
  %1459 = vmatprep.subr.mxu0 0.0
  %1460 = vmatpush1.msra.mxu0 %v32
  %1461 = vmatprep.subr.mxu0 0.0
  %1462 = vmatpush1.msra.mxu0 %v33
  %1463 = vmatprep.subr.mxu0 0.0
  %1464 = vmatpush1.msra.mxu0 %v34
  %1465 = vmatprep.subr.mxu0 0.0
  %1466 = vmatpush1.msra.mxu0 %v35
  %1467 = vmatprep.subr.mxu0 0.0
  %1468 = vmatpush1.msra.mxu0 %v36
  %1469 = vmatprep.subr.mxu0 0.0
  %1470 = vmatpush1.msra.mxu0 %v37
  %1471 = vmatprep.subr.mxu0 0.0
  %1472 = vmatpush1.msra.mxu0 %v352
  %1473 = vmatprep.subr.mxu0 0.0
  %1474 = vmatpush1.msra.mxu0 0.0
  %1475 = vmatprep.subr.mxu0 0.0
  %1476 = vmatpush1.msra.mxu0 0.0
  %1477 = vmatprep.subr.mxu0 0.0
  %1478 = vmatpush1.msra.mxu0 0.0
  %1479 = vmatprep.subr.mxu0 0.0
  %1480 = vmatpush1.msra.mxu0 0.0
  %1481 = vmatprep.subr.mxu0 0.0
  %1482 = vmatpush1.msra.mxu0 0.0
  %1483 = vmatprep.subr.mxu0 0.0
  %1484 = vmatpush1.msra.mxu0 0.0
  %1485 = vmatprep.subr.mxu0 0.0
  %1486 = vmatpush1.msra.mxu0 0.0
  %1487 = vmatprep.subr.mxu0 0.0
  %1488 = vmatpush1.msra.mxu0 0.0
  %1489 = vmatprep.subr.mxu0 0.0
  %1490 = vmatpush1.msra.mxu0 0.0
  %1491 = vmatprep.subr.mxu0 0.0
  %1492 = vmatpush1.msra.mxu0 0.0
  %1493 = vmatprep.subr.mxu0 0.0
  %1494 = vmatpush1.msra.mxu0 0.0
  %1495 = vmatprep.subr.mxu0 0.0
  %1496 = vmatpush1.msra.mxu0 0.0
  %1497 = vmatprep.subr.mxu0 0.0
  %1498 = vmatpush1.msra.mxu0 0.0
  %1499 = vmatprep.subr.mxu0 0.0
  %1500 = vmatpush1.msra.mxu0 0.0
  %1501 = vmatprep.subr.mxu0 0.0
  %1502 = vmatpush1.msra.mxu0 0.0
  %1503 = vmatprep.subr.mxu0 0.0
  %1504 = vmatpush1.msra.mxu0 0.0
  %1505 = vmatprep.subr.mxu0 0.0
  %1506 = vmatpush1.msra.mxu0 0.0
  %1507 = vmatprep.subr.mxu0 0.0
  %1508 = vmatpush1.msra.mxu0 0.0
  %1509 = vmatprep.subr.mxu0 0.0
  %1510 = vmatpush1.msra.mxu0 0.0
  %1511 = vmatprep.subr.mxu0 0.0
  %1512 = vmatpush1.msra.mxu0 0.0
  %1513 = vmatprep.subr.mxu0 0.0
  %1514 = vmatpush1.msra.mxu0 0.0
  %1515 = vmatprep.subr.mxu0 0.0
  %1516 = vmatpush1.msra.mxu0 0.0
  %1517 = vmatprep.subr.mxu0 0.0
  %1518 = vmatpush1.msra.mxu0 0.0
  %1519 = vmatprep.subr.mxu0 0.0
  %1520 = vmatpush1.msra.mxu0 0.0
  %1521 = vmatprep.subr.mxu0 0.0
  %1522 = vmatpush1.msra.mxu0 0.0
  %1523 = vmatprep.mubr.f32.mxu0 0.0
  %1524 = vmatmul.mubr.f32.gmra.mrb[0].mxu0 %v1457
  %v1525 = vpop.f32.mrb[0].mxu0
  %v1526 = vadd.f32 0.0, %v1525
  %v1527 = vpop.f32.mrb[0].mxu0
  %1528 = vdwg.mxu0
  %v1529 = vadd.f32 %v1453, %v1526
  %v1530 = vtanh.pop %v1529
  %1531 = vst.msk [vmem:[#allocation2 + $0x28] sm:$0xff] %vm193, %v1530
  %1532 = vmatprep.subr.mxu0 0.0
  %1533 = vmatpush1.msra.mxu0 %v18
  %1534 = vmatprep.subr.mxu0 0.0
  %1535 = vmatpush1.msra.mxu0 %v19
  %1536 = vmatprep.subr.mxu0 0.0
  %1537 = vmatpush1.msra.mxu0 %v20
  %1538 = vmatprep.subr.mxu0 0.0
  %1539 = vmatpush1.msra.mxu0 %v21
  %1540 = vmatprep.subr.mxu0 0.0
  %1541 = vmatpush1.msra.mxu0 %v22
  %1542 = vmatprep.subr.mxu0 0.0
  %1543 = vmatpush1.msra.mxu0 %v23
  %1544 = vmatprep.subr.mxu0 0.0
  %1545 = vmatpush1.msra.mxu0 %v198
  %1546 = vmatprep.subr.mxu0 0.0
  %1547 = vmatpush1.msra.mxu0 0.0
  %1548 = vmatprep.subr.mxu0 0.0
  %1549 = vmatpush1.msra.mxu0 0.0
  %1550 = vmatprep.subr.mxu0 0.0
  %1551 = vmatpush1.msra.mxu0 0.0
  %1552 = vmatprep.subr.mxu0 0.0
  %1553 = vmatpush1.msra.mxu0 0.0
  %1554 = vmatprep.subr.mxu0 0.0
  %1555 = vmatpush1.msra.mxu0 0.0
  %1556 = vmatprep.subr.mxu0 0.0
  %1557 = vmatpush1.msra.mxu0 0.0
  %1558 = vmatprep.subr.mxu0 0.0
  %1559 = vmatpush1.msra.mxu0 0.0
  %1560 = vmatprep.subr.mxu0 0.0
  %1561 = vmatpush1.msra.mxu0 0.0
  %1562 = vmatprep.subr.mxu0 0.0
  %1563 = vmatpush1.msra.mxu0 0.0
  %1564 = vmatprep.subr.mxu0 0.0
  %1565 = vmatpush1.msra.mxu0 0.0
  %1566 = vmatprep.subr.mxu0 0.0
  %1567 = vmatpush1.msra.mxu0 0.0
  %1568 = vmatprep.subr.mxu0 0.0
  %1569 = vmatpush1.msra.mxu0 0.0
  %1570 = vmatprep.subr.mxu0 0.0
  %1571 = vmatpush1.msra.mxu0 0.0
  %1572 = vmatprep.subr.mxu0 0.0
  %1573 = vmatpush1.msra.mxu0 0.0
  %1574 = vmatprep.subr.mxu0 0.0
  %1575 = vmatpush1.msra.mxu0 0.0
  %1576 = vmatprep.subr.mxu0 0.0
  %1577 = vmatpush1.msra.mxu0 0.0
  %1578 = vmatprep.subr.mxu0 0.0
  %1579 = vmatpush1.msra.mxu0 0.0
  %1580 = vmatprep.subr.mxu0 0.0
  %1581 = vmatpush1.msra.mxu0 0.0
  %1582 = vmatprep.subr.mxu0 0.0
  %1583 = vmatpush1.msra.mxu0 0.0
  %1584 = vmatprep.subr.mxu0 0.0
  %1585 = vmatpush1.msra.mxu0 0.0
  %1586 = vmatprep.subr.mxu0 0.0
  %1587 = vmatpush1.msra.mxu0 0.0
  %1588 = vmatprep.subr.mxu0 0.0
  %1589 = vmatpush1.msra.mxu0 0.0
  %1590 = vmatprep.subr.mxu0 0.0
  %1591 = vmatpush1.msra.mxu0 0.0
  %1592 = vmatprep.subr.mxu0 0.0
  %1593 = vmatpush1.msra.mxu0 0.0
  %1594 = vmatprep.subr.mxu0 0.0
  %1595 = vmatpush1.msra.mxu0 0.0
  %1596 = vmatprep.mubr.f32.mxu0 0.0
  %1597 = vmatmul.mubr.f32.gmra.mrb[0].mxu0 %v1384
  %v1598 = vpop.f32.mrb[0].mxu0
  %v1599 = vadd.f32 0.0, %v1598
  %v1600 = vpop.f32.mrb[0].mxu0
  %1601 = vdwg.mxu0
  %v1602 = vadd.f32 %v185, %v1599
  %v1603 = vtanh.pop %v1602
  %v1605 = vsel %vm193, %v1603, 0
  %1607 = vmatprep.subr.mxu0 0.0
  %1608 = vmatpush1.msra.mxu0 %v25
  %1609 = vmatprep.subr.mxu0 0.0
  %1610 = vmatpush1.msra.mxu0 %v26
  %1611 = vmatprep.subr.mxu0 0.0
  %1612 = vmatpush1.msra.mxu0 %v27
  %1613 = vmatprep.subr.mxu0 0.0
  %1614 = vmatpush1.msra.mxu0 %v28
  %1615 = vmatprep.subr.mxu0 0.0
  %1616 = vmatpush1.msra.mxu0 %v29
  %1617 = vmatprep.subr.mxu0 0.0
  %1618 = vmatpush1.msra.mxu0 %v30
  %1619 = vmatprep.subr.mxu0 0.0
  %1620 = vmatpush1.msra.mxu0 %v276
  %1621 = vmatprep.subr.mxu0 0.0
  %1622 = vmatpush1.msra.mxu0 0.0
  %1623 = vmatprep.subr.mxu0 0.0
  %1624 = vmatpush1.msra.mxu0 0.0
  %1625 = vmatprep.subr.mxu0 0.0
  %1626 = vmatpush1.msra.mxu0 0.0
  %1627 = vmatprep.subr.mxu0 0.0
  %1628 = vmatpush1.msra.mxu0 0.0
  %1629 = vmatprep.subr.mxu0 0.0
  %1630 = vmatpush1.msra.mxu0 0.0
  %1631 = vmatprep.subr.mxu0 0.0
  %1632 = vmatpush1.msra.mxu0 0.0
  %1633 = vmatprep.subr.mxu0 0.0
  %1634 = vmatpush1.msra.mxu0 0.0
  %1635 = vmatprep.subr.mxu0 0.0
  %1636 = vmatpush1.msra.mxu0 0.0
  %1637 = vmatprep.subr.mxu0 0.0
  %1638 = vmatpush1.msra.mxu0 0.0
  %1639 = vmatprep.subr.mxu0 0.0
  %1640 = vmatpush1.msra.mxu0 0.0
  %1641 = vmatprep.subr.mxu0 0.0
  %1642 = vmatpush1.msra.mxu0 0.0
  %1643 = vmatprep.subr.mxu0 0.0
  %1644 = vmatpush1.msra.mxu0 0.0
  %1645 = vmatprep.subr.mxu0 0.0
  %1646 = vmatpush1.msra.mxu0 0.0
  %1647 = vmatprep.subr.mxu0 0.0
  %1648 = vmatpush1.msra.mxu0 0.0
  %1649 = vmatprep.subr.mxu0 0.0
  %1650 = vmatpush1.msra.mxu0 0.0
  %1651 = vmatprep.subr.mxu0 0.0
  %1652 = vmatpush1.msra.mxu0 0.0
  %1653 = vmatprep.subr.mxu0 0.0
  %1654 = vmatpush1.msra.mxu0 0.0
  %1655 = vmatprep.subr.mxu0 0.0
  %1656 = vmatpush1.msra.mxu0 0.0
  %1657 = vmatprep.subr.mxu0 0.0
  %1658 = vmatpush1.msra.mxu0 0.0
  %1659 = vmatprep.subr.mxu0 0.0
  %1660 = vmatpush1.msra.mxu0 0.0
  %1661 = vmatprep.subr.mxu0 0.0
  %1662 = vmatpush1.msra.mxu0 0.0
  %1663 = vmatprep.subr.mxu0 0.0
  %1664 = vmatpush1.msra.mxu0 0.0
  %1665 = vmatprep.subr.mxu0 0.0
  %1666 = vmatpush1.msra.mxu0 0.0
  %1667 = vmatprep.subr.mxu0 0.0
  %1668 = vmatpush1.msra.mxu0 0.0
  %1669 = vmatprep.subr.mxu0 0.0
  %1670 = vmatpush1.msra.mxu0 0.0
  %1671 = vmatprep.mubr.f32.mxu0 0.0
  %1672 = vmatmul.mubr.f32.gmra.mrb[0].mxu0 %v1605
  %v1673 = vpop.f32.mrb[0].mxu0
  %v1674 = vadd.f32 %v44, %v1673
  %v1675 = vpop.f32.mrb[0].mxu0
  %1676 = vdwg.mxu0
  %v1678 = vsel %vm193, %v1530, 0
  %1680 = vmatprep.subr.mxu0 0.0
  %1681 = vmatpush1.msra.mxu0 %v32
  %1682 = vmatprep.subr.mxu0 0.0
  %1683 = vmatpush1.msra.mxu0 %v33
  %1684 = vmatprep.subr.mxu0 0.0
  %1685 = vmatpush1.msra.mxu0 %v34
  %1686 = vmatprep.subr.mxu0 0.0
  %1687 = vmatpush1.msra.mxu0 %v35
  %1688 = vmatprep.subr.mxu0 0.0
  %1689 = vmatpush1.msra.mxu0 %v36
  %1690 = vmatprep.subr.mxu0 0.0
  %1691 = vmatpush1.msra.mxu0 %v37
  %1692 = vmatprep.subr.mxu0 0.0
  %1693 = vmatpush1.msra.mxu0 %v352
  %1694 = vmatprep.subr.mxu0 0.0
  %1695 = vmatpush1.msra.mxu0 0.0
  %1696 = vmatprep.subr.mxu0 0.0
  %1697 = vmatpush1.msra.mxu0 0.0
  %1698 = vmatprep.subr.mxu0 0.0
  %1699 = vmatpush1.msra.mxu0 0.0
  %1700 = vmatprep.subr.mxu0 0.0
  %1701 = vmatpush1.msra.mxu0 0.0
  %1702 = vmatprep.subr.mxu0 0.0
  %1703 = vmatpush1.msra.mxu0 0.0
  %1704 = vmatprep.subr.mxu0 0.0
  %1705 = vmatpush1.msra.mxu0 0.0
  %1706 = vmatprep.subr.mxu0 0.0
  %1707 = vmatpush1.msra.mxu0 0.0
  %1708 = vmatprep.subr.mxu0 0.0
  %1709 = vmatpush1.msra.mxu0 0.0
  %1710 = vmatprep.subr.mxu0 0.0
  %1711 = vmatpush1.msra.mxu0 0.0
  %1712 = vmatprep.subr.mxu0 0.0
  %1713 = vmatpush1.msra.mxu0 0.0
  %1714 = vmatprep.subr.mxu0 0.0
  %1715 = vmatpush1.msra.mxu0 0.0
  %1716 = vmatprep.subr.mxu0 0.0
  %1717 = vmatpush1.msra.mxu0 0.0
  %1718 = vmatprep.subr.mxu0 0.0
  %1719 = vmatpush1.msra.mxu0 0.0
  %1720 = vmatprep.subr.mxu0 0.0
  %1721 = vmatpush1.msra.mxu0 0.0
  %1722 = vmatprep.subr.mxu0 0.0
  %1723 = vmatpush1.msra.mxu0 0.0
  %1724 = vmatprep.subr.mxu0 0.0
  %1725 = vmatpush1.msra.mxu0 0.0
  %1726 = vmatprep.subr.mxu0 0.0
  %1727 = vmatpush1.msra.mxu0 0.0
  %1728 = vmatprep.subr.mxu0 0.0
  %1729 = vmatpush1.msra.mxu0 0.0
  %1730 = vmatprep.subr.mxu0 0.0
  %1731 = vmatpush1.msra.mxu0 0.0
  %1732 = vmatprep.subr.mxu0 0.0
  %1733 = vmatpush1.msra.mxu0 0.0
  %1734 = vmatprep.subr.mxu0 0.0
  %1735 = vmatpush1.msra.mxu0 0.0
  %1736 = vmatprep.subr.mxu0 0.0
  %1737 = vmatpush1.msra.mxu0 0.0
  %1738 = vmatprep.subr.mxu0 0.0
  %1739 = vmatpush1.msra.mxu0 0.0
  %1740 = vmatprep.subr.mxu0 0.0
  %1741 = vmatpush1.msra.mxu0 0.0
  %1742 = vmatprep.subr.mxu0 0.0
  %1743 = vmatpush1.msra.mxu0 0.0
  %1744 = vmatprep.mubr.f32.mxu0 0.0
  %1745 = vmatmul.mubr.f32.gmra.mrb[0].mxu0 %v1678
  %v1746 = vpop.f32.mrb[0].mxu0
  %v1747 = vadd.f32 0.0, %v1746
  %v1748 = vpop.f32.mrb[0].mxu0
  %1749 = vdwg.mxu0
  %v1750 = vadd.f32 %v1674, %v1747
  %v1751 = vtanh.pop %v1750
  %1752 = vst.msk [vmem:[#allocation2 + $0x30] sm:$0xff] %vm193, %v1751
  %1753 = vmatprep.subr.mxu0 0.0
  %1754 = vmatpush1.msra.mxu0 %v18
  %1755 = vmatprep.subr.mxu0 0.0
  %1756 = vmatpush1.msra.mxu0 %v19
  %1757 = vmatprep.subr.mxu0 0.0
  %1758 = vmatpush1.msra.mxu0 %v20
  %1759 = vmatprep.subr.mxu0 0.0
  %1760 = vmatpush1.msra.mxu0 %v21
  %1761 = vmatprep.subr.mxu0 0.0
  %1762 = vmatpush1.msra.mxu0 %v22
  %1763 = vmatprep.subr.mxu0 0.0
  %1764 = vmatpush1.msra.mxu0 %v23
  %1765 = vmatprep.subr.mxu0 0.0
  %1766 = vmatpush1.msra.mxu0 %v198
  %1767 = vmatprep.subr.mxu0 0.0
  %1768 = vmatpush1.msra.mxu0 0.0
  %1769 = vmatprep.subr.mxu0 0.0
  %1770 = vmatpush1.msra.mxu0 0.0
  %1771 = vmatprep.subr.mxu0 0.0
  %1772 = vmatpush1.msra.mxu0 0.0
  %1773 = vmatprep.subr.mxu0 0.0
  %1774 = vmatpush1.msra.mxu0 0.0
  %1775 = vmatprep.subr.mxu0 0.0
  %1776 = vmatpush1.msra.mxu0 0.0
  %1777 = vmatprep.subr.mxu0 0.0
  %1778 = vmatpush1.msra.mxu0 0.0
  %1779 = vmatprep.subr.mxu0 0.0
  %1780 = vmatpush1.msra.mxu0 0.0
  %1781 = vmatprep.subr.mxu0 0.0
  %1782 = vmatpush1.msra.mxu0 0.0
  %1783 = vmatprep.subr.mxu0 0.0
  %1784 = vmatpush1.msra.mxu0 0.0
  %1785 = vmatprep.subr.mxu0 0.0
  %1786 = vmatpush1.msra.mxu0 0.0
  %1787 = vmatprep.subr.mxu0 0.0
  %1788 = vmatpush1.msra.mxu0 0.0
  %1789 = vmatprep.subr.mxu0 0.0
  %1790 = vmatpush1.msra.mxu0 0.0
  %1791 = vmatprep.subr.mxu0 0.0
  %1792 = vmatpush1.msra.mxu0 0.0
  %1793 = vmatprep.subr.mxu0 0.0
  %1794 = vmatpush1.msra.mxu0 0.0
  %1795 = vmatprep.subr.mxu0 0.0
  %1796 = vmatpush1.msra.mxu0 0.0
  %1797 = vmatprep.subr.mxu0 0.0
  %1798 = vmatpush1.msra.mxu0 0.0
  %1799 = vmatprep.subr.mxu0 0.0
  %1800 = vmatpush1.msra.mxu0 0.0
  %1801 = vmatprep.subr.mxu0 0.0
  %1802 = vmatpush1.msra.mxu0 0.0
  %1803 = vmatprep.subr.mxu0 0.0
  %1804 = vmatpush1.msra.mxu0 0.0
  %1805 = vmatprep.subr.mxu0 0.0
  %1806 = vmatpush1.msra.mxu0 0.0
  %1807 = vmatprep.subr.mxu0 0.0
  %1808 = vmatpush1.msra.mxu0 0.0
  %1809 = vmatprep.subr.mxu0 0.0
  %1810 = vmatpush1.msra.mxu0 0.0
  %1811 = vmatprep.subr.mxu0 0.0
  %1812 = vmatpush1.msra.mxu0 0.0
  %1813 = vmatprep.subr.mxu0 0.0
  %1814 = vmatpush1.msra.mxu0 0.0
  %1815 = vmatprep.subr.mxu0 0.0
  %1816 = vmatpush1.msra.mxu0 0.0
  %1817 = vmatprep.mubr.f32.mxu0 0.0
  %1818 = vmatmul.mubr.f32.gmra.mrb[0].mxu0 %v1605
  %v1819 = vpop.f32.mrb[0].mxu0
  %v1820 = vadd.f32 0.0, %v1819
  %v1821 = vpop.f32.mrb[0].mxu0
  %1822 = vdwg.mxu0
  %v1823 = vadd.f32 %v190, %v1820
  %v1824 = vtanh.pop %v1823
  %v1826 = vsel %vm193, %v1824, 0
  %1828 = vmatprep.subr.mxu0 0.0
  %1829 = vmatpush1.msra.mxu0 %v25
  %1830 = vmatprep.subr.mxu0 0.0
  %1831 = vmatpush1.msra.mxu0 %v26
  %1832 = vmatprep.subr.mxu0 0.0
  %1833 = vmatpush1.msra.mxu0 %v27
  %1834 = vmatprep.subr.mxu0 0.0
  %1835 = vmatpush1.msra.mxu0 %v28
  %1836 = vmatprep.subr.mxu0 0.0
  %1837 = vmatpush1.msra.mxu0 %v29
  %1838 = vmatprep.subr.mxu0 0.0
  %1839 = vmatpush1.msra.mxu0 %v30
  %1840 = vmatprep.subr.mxu0 0.0
  %1841 = vmatpush1.msra.mxu0 %v276
  %1842 = vmatprep.subr.mxu0 0.0
  %1843 = vmatpush1.msra.mxu0 0.0
  %1844 = vmatprep.subr.mxu0 0.0
  %1845 = vmatpush1.msra.mxu0 0.0
  %1846 = vmatprep.subr.mxu0 0.0
  %1847 = vmatpush1.msra.mxu0 0.0
  %1848 = vmatprep.subr.mxu0 0.0
  %1849 = vmatpush1.msra.mxu0 0.0
  %1850 = vmatprep.subr.mxu0 0.0
  %1851 = vmatpush1.msra.mxu0 0.0
  %1852 = vmatprep.subr.mxu0 0.0
  %1853 = vmatpush1.msra.mxu0 0.0
  %1854 = vmatprep.subr.mxu0 0.0
  %1855 = vmatpush1.msra.mxu0 0.0
  %1856 = vmatprep.subr.mxu0 0.0
  %1857 = vmatpush1.msra.mxu0 0.0
  %1858 = vmatprep.subr.mxu0 0.0
  %1859 = vmatpush1.msra.mxu0 0.0
  %1860 = vmatprep.subr.mxu0 0.0
  %1861 = vmatpush1.msra.mxu0 0.0
  %1862 = vmatprep.subr.mxu0 0.0
  %1863 = vmatpush1.msra.mxu0 0.0
  %1864 = vmatprep.subr.mxu0 0.0
  %1865 = vmatpush1.msra.mxu0 0.0
  %1866 = vmatprep.subr.mxu0 0.0
  %1867 = vmatpush1.msra.mxu0 0.0
  %1868 = vmatprep.subr.mxu0 0.0
  %1869 = vmatpush1.msra.mxu0 0.0
  %1870 = vmatprep.subr.mxu0 0.0
  %1871 = vmatpush1.msra.mxu0 0.0
  %1872 = vmatprep.subr.mxu0 0.0
  %1873 = vmatpush1.msra.mxu0 0.0
  %1874 = vmatprep.subr.mxu0 0.0
  %1875 = vmatpush1.msra.mxu0 0.0
  %1876 = vmatprep.subr.mxu0 0.0
  %1877 = vmatpush1.msra.mxu0 0.0
  %1878 = vmatprep.subr.mxu0 0.0
  %1879 = vmatpush1.msra.mxu0 0.0
  %1880 = vmatprep.subr.mxu0 0.0
  %1881 = vmatpush1.msra.mxu0 0.0
  %1882 = vmatprep.subr.mxu0 0.0
  %1883 = vmatpush1.msra.mxu0 0.0
  %1884 = vmatprep.subr.mxu0 0.0
  %1885 = vmatpush1.msra.mxu0 0.0
  %1886 = vmatprep.subr.mxu0 0.0
  %1887 = vmatpush1.msra.mxu0 0.0
  %1888 = vmatprep.subr.mxu0 0.0
  %1889 = vmatpush1.msra.mxu0 0.0
  %1890 = vmatprep.subr.mxu0 0.0
  %1891 = vmatpush1.msra.mxu0 0.0
  %1892 = vmatprep.mubr.f32.mxu0 0.0
  %1893 = vmatmul.mubr.f32.gmra.mrb[0].mxu0 %v1826
  %v1894 = vpop.f32.mrb[0].mxu0
  %v1895 = vadd.f32 %v44, %v1894
  %v1896 = vpop.f32.mrb[0].mxu0
  %1897 = vdwg.mxu0
  %v1899 = vsel %vm193, %v1751, 0
  %1901 = vmatprep.subr.mxu0 0.0
  %1902 = vmatpush1.msra.mxu0 %v32
  %1903 = vmatprep.subr.mxu0 0.0
  %1904 = vmatpush1.msra.mxu0 %v33
  %1905 = vmatprep.subr.mxu0 0.0
  %1906 = vmatpush1.msra.mxu0 %v34
  %1907 = vmatprep.subr.mxu0 0.0
  %1908 = vmatpush1.msra.mxu0 %v35
  %1909 = vmatprep.subr.mxu0 0.0
  %1910 = vmatpush1.msra.mxu0 %v36
  %1911 = vmatprep.subr.mxu0 0.0
  %1912 = vmatpush1.msra.mxu0 %v37
  %1913 = vmatprep.subr.mxu0 0.0
  %1914 = vmatpush1.msra.mxu0 %v352
  %1915 = vmatprep.subr.mxu0 0.0
  %1916 = vmatpush1.msra.mxu0 0.0
  %1917 = vmatprep.subr.mxu0 0.0
  %1918 = vmatpush1.msra.mxu0 0.0
  %1919 = vmatprep.subr.mxu0 0.0
  %1920 = vmatpush1.msra.mxu0 0.0
  %1921 = vmatprep.subr.mxu0 0.0
  %1922 = vmatpush1.msra.mxu0 0.0
  %1923 = vmatprep.subr.mxu0 0.0
  %1924 = vmatpush1.msra.mxu0 0.0
  %1925 = vmatprep.subr.mxu0 0.0
  %1926 = vmatpush1.msra.mxu0 0.0
  %1927 = vmatprep.subr.mxu0 0.0
  %1928 = vmatpush1.msra.mxu0 0.0
  %1929 = vmatprep.subr.mxu0 0.0
  %1930 = vmatpush1.msra.mxu0 0.0
  %1931 = vmatprep.subr.mxu0 0.0
  %1932 = vmatpush1.msra.mxu0 0.0
  %1933 = vmatprep.subr.mxu0 0.0
  %1934 = vmatpush1.msra.mxu0 0.0
  %1935 = vmatprep.subr.mxu0 0.0
  %1936 = vmatpush1.msra.mxu0 0.0
  %1937 = vmatprep.subr.mxu0 0.0
  %1938 = vmatpush1.msra.mxu0 0.0
  %1939 = vmatprep.subr.mxu0 0.0
  %1940 = vmatpush1.msra.mxu0 0.0
  %1941 = vmatprep.subr.mxu0 0.0
  %1942 = vmatpush1.msra.mxu0 0.0
  %1943 = vmatprep.subr.mxu0 0.0
  %1944 = vmatpush1.msra.mxu0 0.0
  %1945 = vmatprep.subr.mxu0 0.0
  %1946 = vmatpush1.msra.mxu0 0.0
  %1947 = vmatprep.subr.mxu0 0.0
  %1948 = vmatpush1.msra.mxu0 0.0
  %1949 = vmatprep.subr.mxu0 0.0
  %1950 = vmatpush1.msra.mxu0 0.0
  %1951 = vmatprep.subr.mxu0 0.0
  %1952 = vmatpush1.msra.mxu0 0.0
  %1953 = vmatprep.subr.mxu0 0.0
  %1954 = vmatpush1.msra.mxu0 0.0
  %1955 = vmatprep.subr.mxu0 0.0
  %1956 = vmatpush1.msra.mxu0 0.0
  %1957 = vmatprep.subr.mxu0 0.0
  %1958 = vmatpush1.msra.mxu0 0.0
  %1959 = vmatprep.subr.mxu0 0.0
  %1960 = vmatpush1.msra.mxu0 0.0
  %1961 = vmatprep.subr.mxu0 0.0
  %1962 = vmatpush1.msra.mxu0 0.0
  %1963 = vmatprep.subr.mxu0 0.0
  %1964 = vmatpush1.msra.mxu0 0.0
  %1965 = vmatprep.mubr.f32.mxu0 0.0
  %1966 = vmatmul.mubr.f32.gmra.mrb[0].mxu0 %v1899
  %v1967 = vpop.f32.mrb[0].mxu0
  %v1968 = vadd.f32 0.0, %v1967
  %v1969 = vpop.f32.mrb[0].mxu0
  %1970 = vdwg.mxu0
  %v1971 = vadd.f32 %v1895, %v1968
  %v1972 = vtanh.pop %v1971
  %1973 = vst.msk [vmem:[#allocation2 + $0x38] sm:$0xff] %vm193, %v1972
  %1974 = vst.msk [vmem:[%s4] sm:$0xff] %vm193, %v1824
  %1975 = vst.msk [vmem:[%s4 + $0x8] sm:$0xff] %vm193, %v1972
  %v1976 = vld [vmem:[%s2] sm:$0xff]
  %v1977 = vld [vmem:[%s2 + $0x8] sm:$0xff]
  %v1978 = vld [vmem:[%s2 + $0x10] sm:$0xff]
  %v1979 = vld [vmem:[%s2 + $0x18] sm:$0xff]
  %v1980 = vld [vmem:[%s2 + $0x20] sm:$0xff]
  %v1981 = vld [vmem:[%s2 + $0x28] sm:$0xff]
  %v1982 = vld [vmem:[%s2 + $0x30] sm:$0x3]
  %v1983 = vld [vmem:[%s2 + $0x38] sm:$0x1]
  %v1984 = vld [vmem:[#allocation2] sm:$0xff]
  %v1985 = vld [vmem:[#allocation2 + $0x8] sm:$0xff]
  %v1986 = vld [vmem:[#allocation2 + $0x10] sm:$0xff]
  %v1987 = vld [vmem:[#allocation2 + $0x18] sm:$0xff]
  %v1988 = vld [vmem:[#allocation2 + $0x20] sm:$0xff]
  %v1989 = vld [vmem:[#allocation2 + $0x28] sm:$0xff]
  %v1990 = vld [vmem:[#allocation2 + $0x30] sm:$0xff]
  %v1991 = vld [vmem:[#allocation2 + $0x38] sm:$0xff]
  %v1992 = vlaneseq
  %v1993 = vshrl.u32 %v1992, 7
  %v1994 = vsub.s32 0, %v1993
  %v1995 = vrot.slane %v1983, %v1994
  %v1997 = vsel %vm193, %v1984, 0
  %v2000 = vsel %vm193, %v1985, 0
  %v2003 = vsel %vm193, %v1986, 0
  %v2006 = vsel %vm193, %v1987, 0
  %v2009 = vsel %vm193, %v1988, 0
  %v2012 = vsel %vm193, %v1989, 0
  %v2015 = vsel %vm193, %v1990, 0
  %v2018 = vsel %vm193, %v1991, 0
  %v2021 = vsel %vm84, %v1982, 0
  %2023 = vmatprep.subr.mxu0 0.0
  %2024 = vmatpush1.msra.mxu0 %v1976
  %2025 = vmatprep.subr.mxu0 0.0
  %2026 = vmatpush1.msra.mxu0 %v1977
  %2027 = vmatprep.subr.mxu0 0.0
  %2028 = vmatpush1.msra.mxu0 %v1978
  %2029 = vmatprep.subr.mxu0 0.0
  %2030 = vmatpush1.msra.mxu0 %v1979
  %2031 = vmatprep.subr.mxu0 0.0
  %2032 = vmatpush1.msra.mxu0 %v1980
  %2033 = vmatprep.subr.mxu0 0.0
  %2034 = vmatpush1.msra.mxu0 %v1981
  %2035 = vmatprep.subr.mxu0 0.0
  %2036 = vmatpush1.msra.mxu0 %v2021
  %2037 = vmatprep.subr.mxu0 0.0
  %2038 = vmatpush1.msra.mxu0 0.0
  %2039 = vmatprep.subr.mxu0 0.0
  %2040 = vmatpush1.msra.mxu0 0.0
  %2041 = vmatprep.subr.mxu0 0.0
  %2042 = vmatpush1.msra.mxu0 0.0
  %2043 = vmatprep.subr.mxu0 0.0
  %2044 = vmatpush1.msra.mxu0 0.0
  %2045 = vmatprep.subr.mxu0 0.0
  %2046 = vmatpush1.msra.mxu0 0.0
  %2047 = vmatprep.subr.mxu0 0.0
  %2048 = vmatpush1.msra.mxu0 0.0
  %2049 = vmatprep.subr.mxu0 0.0
  %2050 = vmatpush1.msra.mxu0 0.0
  %2051 = vmatprep.subr.mxu0 0.0
  %2052 = vmatpush1.msra.mxu0 0.0
  %2053 = vmatprep.subr.mxu0 0.0
  %2054 = vmatpush1.msra.mxu0 0.0
  %2055 = vmatprep.subr.mxu0 0.0
  %2056 = vmatpush1.msra.mxu0 0.0
  %2057 = vmatprep.subr.mxu0 0.0
  %2058 = vmatpush1.msra.mxu0 0.0
  %2059 = vmatprep.subr.mxu0 0.0
  %2060 = vmatpush1.msra.mxu0 0.0
  %2061 = vmatprep.subr.mxu0 0.0
  %2062 = vmatpush1.msra.mxu0 0.0
  %2063 = vmatprep.subr.mxu0 0.0
  %2064 = vmatpush1.msra.mxu0 0.0
  %2065 = vmatprep.subr.mxu0 0.0
  %2066 = vmatpush1.msra.mxu0 0.0
  %2067 = vmatprep.subr.mxu0 0.0
  %2068 = vmatpush1.msra.mxu0 0.0
  %2069 = vmatprep.subr.mxu0 0.0
  %2070 = vmatpush1.msra.mxu0 0.0
  %2071 = vmatprep.subr.mxu0 0.0
  %2072 = vmatpush1.msra.mxu0 0.0
  %2073 = vmatprep.subr.mxu0 0.0
  %2074 = vmatpush1.msra.mxu0 0.0
  %2075 = vmatprep.subr.mxu0 0.0
  %2076 = vmatpush1.msra.mxu0 0.0
  %2077 = vmatprep.subr.mxu0 0.0
  %2078 = vmatpush1.msra.mxu0 0.0
  %2079 = vmatprep.subr.mxu0 0.0
  %2080 = vmatpush1.msra.mxu0 0.0
  %2081 = vmatprep.subr.mxu0 0.0
  %2082 = vmatpush1.msra.mxu0 0.0
  %2083 = vmatprep.subr.mxu0 0.0
  %2084 = vmatpush1.msra.mxu0 0.0
  %2085 = vmatprep.subr.mxu0 0.0
  %2086 = vmatpush1.msra.mxu0 0.0
  %2087 = vmatprep.mubr.f32.mxu0 0.0
  %2088 = vmatmul.mubr.f32.gmra.mrb[0].mxu0 %v1997
  %v2089 = vpop.f32.mrb[0].mxu0
  %v2090 = vadd.f32 %v1995, %v2089
  %v2091 = vpop.f32.mrb[0].mxu0
  %2092 = vmatprep.mubr.f32.mxu0 0.0
  %2093 = vmatmul.mubr.f32.gmra.mrb[0].mxu0 %v2000
  %v2094 = vpop.f32.mrb[0].mxu0
  %v2095 = vadd.f32 %v1995, %v2094
  %v2096 = vpop.f32.mrb[0].mxu0
  %2097 = vmatprep.mubr.f32.mxu0 0.0
  %2098 = vmatmul.mubr.f32.gmra.mrb[0].mxu0 %v2003
  %v2099 = vpop.f32.mrb[0].mxu0
  %v2100 = vadd.f32 %v1995, %v2099
  %v2101 = vpop.f32.mrb[0].mxu0
  %2102 = vmatprep.mubr.f32.mxu0 0.0
  %2103 = vmatmul.mubr.f32.gmra.mrb[0].mxu0 %v2006
  %v2104 = vpop.f32.mrb[0].mxu0
  %v2105 = vadd.f32 %v1995, %v2104
  %v2106 = vpop.f32.mrb[0].mxu0
  %2107 = vmatprep.mubr.f32.mxu0 0.0
  %2108 = vmatmul.mubr.f32.gmra.mrb[0].mxu0 %v2009
  %v2109 = vpop.f32.mrb[0].mxu0
  %v2110 = vadd.f32 %v1995, %v2109
  %v2111 = vpop.f32.mrb[0].mxu0
  %2112 = vmatprep.mubr.f32.mxu0 0.0
  %2113 = vmatmul.mubr.f32.gmra.mrb[0].mxu0 %v2012
  %v2114 = vpop.f32.mrb[0].mxu0
  %v2115 = vadd.f32 %v1995, %v2114
  %v2116 = vpop.f32.mrb[0].mxu0
  %2117 = vmatprep.mubr.f32.mxu0 0.0
  %2118 = vmatmul.mubr.f32.gmra.mrb[0].mxu0 %v2015
  %v2119 = vpop.f32.mrb[0].mxu0
  %v2120 = vadd.f32 %v1995, %v2119
  %v2121 = vpop.f32.mrb[0].mxu0
  %2122 = vmatprep.mubr.f32.mxu0 0.0
  %2123 = vmatmul.mubr.f32.gmra.mrb[0].mxu0 %v2018
  %v2124 = vpop.f32.mrb[0].mxu0
  %v2125 = vadd.f32 %v1995, %v2124
  %v2126 = vpop.f32.mrb[0].mxu0
  %2127 = vdwg.mxu0
  %2128 = vst [vmem:[%s3] sm:$0xff] %v2090
  %2129 = vst [vmem:[%s3 + $0x8] sm:$0xff] %v2095
  %2130 = vst [vmem:[%s3 + $0x10] sm:$0xff] %v2100
  %2131 = vst [vmem:[%s3 + $0x18] sm:$0xff] %v2105
  %2132 = vst [vmem:[%s3 + $0x20] sm:$0xff] %v2110
  %2133 = vst [vmem:[%s3 + $0x28] sm:$0xff] %v2115
  %2134 = vst [vmem:[%s3 + $0x30] sm:$0xff] %v2120
  %2135 = vst [vmem:[%s3 + $0x38] sm:$0xff] %v2125
  // Predicated region
  $region14: #{rnn_model_forward.1} parent=0 // pred_check
    _
  $region15: #{rnn_model_forward.1} parent=0 // pred_check_branch
    %2137 = sbr.rel (0) target = $region17
  $region16: #{rnn_model_forward.1} parent=0 // pred_region
    _
  $region17: #{rnn_model_forward.1} parent=0 // pred_fallthru
    _
  // Predicated region
  $region18: #{rnn_model_forward.1} parent=0 // pred_check
    _
  $region19: #{rnn_model_forward.1} parent=0 // pred_check_branch
    %2139 = sbr.rel (0) target = $region21
  $region20: #{rnn_model_forward.1} parent=0 // pred_region
    _
  $region21: #{rnn_model_forward.1} parent=0 // pred_fallthru
    _
  // Predicated region
  $region22: #{rnn_model_forward.1} parent=0 // pred_check
    _
  $region23: #{rnn_model_forward.1} parent=0 // pred_check_branch
    %2141 = sbr.rel (0) target = $region25
  $region24: #{rnn_model_forward.1} parent=0 // pred_region
    _
  $region25: #{rnn_model_forward.1} parent=0 // pred_fallthru
    _
  // Predicated region
  $region26: #{rnn_model_forward.1} parent=0 // pred_check
    _
  $region27: #{rnn_model_forward.1} parent=0 // pred_check_branch
    %2143 = sbr.rel (0) target = $region29
  $region28: #{rnn_model_forward.1} parent=0 // pred_region
    _
  $region29: #{rnn_model_forward.1} parent=0 // pred_fallthru
    _

</llo_original>
